<compile_context>
chip_gen: v6e
topology: v6e:2x2x1
jax: 0.10.0
libtpu: 0.0.40
codegen_flags: <defaults>
</compile_context>

<pallas_src>
import jax
import jax.numpy as jnp
from jax.experimental import pallas as pl
from jax.experimental.pallas import tpu as pltpu


def _round_up(n, m):
    return ((n + m - 1) // m) * m


# ----------------------------- Pallas kernel --------------------------------
def gru_net_kernel(x_ref,        # (T*Bp, Ip)   time-major, zero-padded
                   w_i_ref,      # (Ip, 3*Hp)   fused [W_ir | W_iz | W_in]
                   b_i_ref,      # (1, 3*Hp)    fused [b_ir+b_hr | b_iz+b_hz | b_in]
                   w_h_ref,      # (Hp, 3*Hp)   fused [W_hr | W_hz | W_hn]
                   b_hn_ref,     # (1, Hp)
                   w_fc_ref,     # (Hp, Op)
                   b_fc_ref,     # (1, Op)
                   out_ref):     # (Bp, Op)
    Bp = out_ref.shape[0]
    Hp = w_h_ref.shape[0]
    T = x_ref.shape[0] // Bp

    # Hoisted input projection: one big MXU pass for all timesteps.
    # Only the hidden-to-hidden matmul stays on the serial chain below.
    xp = (jnp.dot(x_ref[...], w_i_ref[...], preferred_element_type=jnp.float32)
          + b_i_ref[...])                                        # (T*Bp, 3Hp)

    w_h = w_h_ref[...]
    b_hn = b_hn_ref[...]

    h = jnp.zeros((Bp, Hp), jnp.float32)
    # T is tiny & static -> fully unrolled: constant, tile-aligned slices and
    # cross-timestep scheduling visibility for the LLO scheduler.
    for t in range(T):
        gi = xp[t * Bp:(t + 1) * Bp, :]                          # (Bp, 3Hp)
        gh = jnp.dot(h, w_h, preferred_element_type=jnp.float32)  # one fused matmul
        r = jax.nn.sigmoid(gi[:, 0:Hp] + gh[:, 0:Hp])
        z = jax.nn.sigmoid(gi[:, Hp:2 * Hp] + gh[:, Hp:2 * Hp])
        n = jnp.tanh(gi[:, 2 * Hp:] + r * (gh[:, 2 * Hp:] + b_hn))
        h = (1.0 - z) * n + z * h

    out_ref[...] = (jnp.dot(h, w_fc_ref[...], preferred_element_type=jnp.float32)
                    + b_fc_ref[...]).astype(out_ref.dtype)


# ------------------------------ JAX wrapper ----------------------------------
@jax.jit
def gru_net_forward(x, params):
    """x: [B, T, I] batch-first (PyTorch layout). Returns [B, O] float32."""
    B, T, I = x.shape
    H = params["w_hr"].shape[0]
    O = params["w_fc"].shape[0]
    f32 = jnp.float32

    Bp = _round_up(B, 8)        # sublane-dense hidden-state / output rows
    Ip = _round_up(I, 128)      # lane-dense x
    Hp = _round_up(H, 128)      # lane-dense hidden state
    Op = _round_up(O, 128)      # lane-dense (unmasked) final store
    G = 3 * Hp

    # Fused + zero-padded weights in right-multiply form, gate order [r | z | n].
    w_i = jnp.zeros((Ip, G), f32)
    w_i = w_i.at[:I, 0:H].set(params["w_ir"].T.astype(f32))
    w_i = w_i.at[:I, Hp:Hp + H].set(params["w_iz"].T.astype(f32))
    w_i = w_i.at[:I, 2 * Hp:2 * Hp + H].set(params["w_in"].T.astype(f32))

    # r/z biases from both paths pre-summed; n column carries only b_in
    # (b_hn must stay inside the r*(...) term, so it is passed separately).
    b_i = jnp.zeros((1, G), f32)
    b_i = b_i.at[0, 0:H].set((params["b_ir"] + params["b_hr"]).astype(f32))
    b_i = b_i.at[0, Hp:Hp + H].set((params["b_iz"] + params["b_hz"]).astype(f32))
    b_i = b_i.at[0, 2 * Hp:2 * Hp + H].set(params["b_in"].astype(f32))

    w_h = jnp.zeros((Hp, G), f32)
    w_h = w_h.at[:H, 0:H].set(params["w_hr"].T.astype(f32))
    w_h = w_h.at[:H, Hp:Hp + H].set(params["w_hz"].T.astype(f32))
    w_h = w_h.at[:H, 2 * Hp:2 * Hp + H].set(params["w_hn"].T.astype(f32))

    b_hn = jnp.zeros((1, Hp), f32).at[0, :H].set(params["b_hn"].astype(f32))
    w_fc = jnp.zeros((Hp, Op), f32).at[:H, :O].set(params["w_fc"].T.astype(f32))
    b_fc = jnp.zeros((1, Op), f32).at[0, :O].set(params["b_fc"].astype(f32))

    # Time-major, zero-padded x flattened to (T*Bp, Ip). The axis swap is fused
    # by XLA into this single padding materialization (no separate HBM round
    # trip), and it makes each timestep a contiguous sublane-aligned row block.
    x_tm = jnp.zeros((T, Bp, Ip), f32).at[:, :B, :I].set(
        jnp.swapaxes(x.astype(f32), 0, 1)).reshape(T * Bp, Ip)

    args = (x_tm, w_i, b_i, w_h, b_hn, w_fc, b_fc)
    flops = 2 * T * B * I * 3 * H + 2 * T * B * H * 3 * H + 2 * B * H * O
    transcendentals = T * B * 3 * H
    bytes_accessed = sum(int(a.size) * 4 for a in args) + Bp * Op * 4

    # NOTE: at these demo shapes everything fits comfortably in VMEM on one
    # TensorCore, so no grid is used. At scale: add a "parallel" batch-tile
    # grid axis (2 TCs on v7x), chunk T with an "arbitrary" axis carrying h in
    # VMEM scratch (v7x has only 64 MiB VMEM), and cast matmul operands to
    # bf16 on v6e/v7x (keep f32 accumulation + f32 elementwise).
    vmem = pl.BlockSpec(memory_space=pltpu.MemorySpace.VMEM)
    out_p = pl.pallas_call(
        gru_net_kernel,
        out_shape=jax.ShapeDtypeStruct((Bp, Op), f32),
        in_specs=[vmem] * len(args),
        out_specs=vmem,
        cost_estimate=pl.CostEstimate(flops=flops,
                                      transcendentals=transcendentals,
                                      bytes_accessed=bytes_accessed),
    )(*args)

    # Strip lane/sublane padding.
    return out_p[:B, :O]


# --------------------------- Deterministic params ----------------------------
def init_params(key, input_size, hidden_size, output_size):
    k = 1.0 / jnp.sqrt(jnp.float32(hidden_size))
    names_shapes = [
        ("w_ir", (hidden_size, input_size)),
        ("w_iz", (hidden_size, input_size)),
        ("w_in", (hidden_size, input_size)),
        ("w_hr", (hidden_size, hidden_size)),
        ("w_hz", (hidden_size, hidden_size)),
        ("w_hn", (hidden_size, hidden_size)),
        ("b_ir", (hidden_size,)), ("b_iz", (hidden_size,)), ("b_in", (hidden_size,)),
        ("b_hr", (hidden_size,)), ("b_hz", (hidden_size,)), ("b_hn", (hidden_size,)),
        ("w_fc", (output_size, hidden_size)),
        ("b_fc", (output_size,)),
    ]
    keys = jax.random.split(key, len(names_shapes))
    return {
        name: jax.random.uniform(kk, shape, jnp.float32, minval=-k, maxval=k)
        for kk, (name, shape) in zip(keys, names_shapes)
    }


# ----------------------------- Pure-JAX reference ----------------------------
def gru_net_reference(x, p):
    B, T, _ = x.shape
    H = p["w_hr"].shape[0]
    h = jnp.zeros((B, H), jnp.float32)
    for t in range(T):
        xt = x[:, t, :]
        r = jax.nn.sigmoid(xt @ p["w_ir"].T + p["b_ir"] + h @ p["w_hr"].T + p["b_hr"])
        z = jax.nn.sigmoid(xt @ p["w_iz"].T + p["b_iz"] + h @ p["w_hz"].T + p["b_hz"])
        n = jnp.tanh(xt @ p["w_in"].T + p["b_in"] + r * (h @ p["w_hn"].T + p["b_hn"]))
        h = (1.0 - z) * n + z * h
    return h @ p["w_fc"].T + p["b_fc"]


if __name__ == "__main__":
    B, T, INPUT, HIDDEN, OUTPUT = 2, 8, 16, 32, 4

    key = jax.random.PRNGKey(0)
    kx, kp = jax.random.split(key)
    x = jax.random.normal(kx, (B, T, INPUT), jnp.float32)
    params = init_params(kp, INPUT, HIDDEN, OUTPUT)

    out = gru_net_forward(x, params)
    out = jax.block_until_ready(out)

    ref = gru_net_reference(x, params)
    assert out.shape == (B, OUTPUT)
    err = jnp.max(jnp.abs(out - ref))
    assert jnp.allclose(out, ref, atol=2e-5, rtol=2e-5), f"mismatch: max abs err {err}"

    print("KERNEL_OK")
</pallas_src>

<mosaic_0001>
module attributes {stable_mosaic.version = 11 : i64} {
  func.func @gru_net_kernel(%arg0: memref<64x128xf32, #tpu.memory_space<vmem>>, %arg1: memref<128x384xf32, #tpu.memory_space<vmem>>, %arg2: memref<1x384xf32, #tpu.memory_space<vmem>>, %arg3: memref<128x384xf32, #tpu.memory_space<vmem>>, %arg4: memref<1x128xf32, #tpu.memory_space<vmem>>, %arg5: memref<128x128xf32, #tpu.memory_space<vmem>>, %arg6: memref<1x128xf32, #tpu.memory_space<vmem>>, %arg7: memref<8x128xf32, #tpu.memory_space<vmem>>) attributes {dimension_semantics = [], scalar_prefetch = 0 : i64, scratch_operands = 0 : i64, tpu.core_type = #tpu.core_type<tc>} {
    %c0 = arith.constant 0 : index
    %c0_0 = arith.constant 0 : index
    %0 = vector.load %arg0[%c0, %c0_0] : memref<64x128xf32, #tpu.memory_space<vmem>>, vector<64x128xf32>
    %c0_1 = arith.constant 0 : index
    %c0_2 = arith.constant 0 : index
    %1 = vector.load %arg1[%c0_1, %c0_2] : memref<128x384xf32, #tpu.memory_space<vmem>>, vector<128x384xf32>
    %cst = arith.constant dense<0.000000e+00> : vector<64x384xf32>
    %2 = tpu.matmul %0, %1, %cst {dimension_numbers = #tpu.dot_dimension_numbers<[1], [0], [0], [1], [0, 0, 1, 1], [], []>} : vector<64x128xf32>, vector<128x384xf32>, vector<64x384xf32> -> vector<64x384xf32>
    %c0_3 = arith.constant 0 : index
    %c0_4 = arith.constant 0 : index
    %3 = vector.load %arg2[%c0_3, %c0_4] : memref<1x384xf32, #tpu.memory_space<vmem>>, vector<1x384xf32>
    %4 = vector.broadcast %3 : vector<1x384xf32> to vector<64x384xf32>
    %5 = arith.addf %2, %4 : vector<64x384xf32>
    %c0_5 = arith.constant 0 : index
    %c0_6 = arith.constant 0 : index
    %6 = vector.load %arg3[%c0_5, %c0_6] : memref<128x384xf32, #tpu.memory_space<vmem>>, vector<128x384xf32>
    %c0_7 = arith.constant 0 : index
    %c0_8 = arith.constant 0 : index
    %7 = vector.load %arg4[%c0_7, %c0_8] : memref<1x128xf32, #tpu.memory_space<vmem>>, vector<1x128xf32>
    %cst_9 = arith.constant 0.000000e+00 : f32
    %8 = vector.broadcast %cst_9 : f32 to vector<8x128xf32>
    %9 = vector.extract_strided_slice %5 {offsets = [0, 0], sizes = [8, 384], strides = [1, 1]} : vector<64x384xf32> to vector<8x384xf32>
    %cst_10 = arith.constant dense<0.000000e+00> : vector<8x384xf32>
    %10 = tpu.matmul %8, %6, %cst_10 {dimension_numbers = #tpu.dot_dimension_numbers<[1], [0], [0], [1], [0, 0, 1, 1], [], []>} : vector<8x128xf32>, vector<128x384xf32>, vector<8x384xf32> -> vector<8x384xf32>
    %11 = vector.extract_strided_slice %9 {offsets = [0, 0], sizes = [8, 128], strides = [1, 1]} : vector<8x384xf32> to vector<8x128xf32>
    %12 = vector.extract_strided_slice %10 {offsets = [0, 0], sizes = [8, 128], strides = [1, 1]} : vector<8x384xf32> to vector<8x128xf32>
    %13 = arith.addf %11, %12 : vector<8x128xf32>
    %14 = arith.negf %13 : vector<8x128xf32>
    %15 = math.exp %14 : vector<8x128xf32>
    %cst_11 = arith.constant 1.000000e+00 : f32
    %16 = vector.broadcast %cst_11 : f32 to vector<8x128xf32>
    %17 = arith.addf %16, %15 : vector<8x128xf32>
    %18 = arith.divf %16, %17 : vector<8x128xf32>
    %19 = vector.extract_strided_slice %9 {offsets = [0, 128], sizes = [8, 128], strides = [1, 1]} : vector<8x384xf32> to vector<8x128xf32>
    %20 = vector.extract_strided_slice %10 {offsets = [0, 128], sizes = [8, 128], strides = [1, 1]} : vector<8x384xf32> to vector<8x128xf32>
    %21 = arith.addf %19, %20 : vector<8x128xf32>
    %22 = arith.negf %21 : vector<8x128xf32>
    %23 = math.exp %22 : vector<8x128xf32>
    %cst_12 = arith.constant 1.000000e+00 : f32
    %24 = vector.broadcast %cst_12 : f32 to vector<8x128xf32>
    %25 = arith.addf %24, %23 : vector<8x128xf32>
    %26 = arith.divf %24, %25 : vector<8x128xf32>
    %27 = vector.extract_strided_slice %9 {offsets = [0, 256], sizes = [8, 128], strides = [1, 1]} : vector<8x384xf32> to vector<8x128xf32>
    %28 = vector.extract_strided_slice %10 {offsets = [0, 256], sizes = [8, 128], strides = [1, 1]} : vector<8x384xf32> to vector<8x128xf32>
    %29 = vector.broadcast %7 : vector<1x128xf32> to vector<8x128xf32>
    %30 = arith.addf %28, %29 : vector<8x128xf32>
    %31 = arith.mulf %18, %30 : vector<8x128xf32>
    %32 = arith.addf %27, %31 : vector<8x128xf32>
    %33 = math.tanh %32 : vector<8x128xf32>
    %cst_13 = arith.constant 1.000000e+00 : f32
    %34 = vector.broadcast %cst_13 : f32 to vector<8x128xf32>
    %35 = arith.subf %34, %26 : vector<8x128xf32>
    %36 = arith.mulf %35, %33 : vector<8x128xf32>
    %37 = arith.mulf %26, %8 : vector<8x128xf32>
    %38 = arith.addf %36, %37 : vector<8x128xf32>
    %39 = vector.extract_strided_slice %5 {offsets = [8, 0], sizes = [8, 384], strides = [1, 1]} : vector<64x384xf32> to vector<8x384xf32>
    %cst_14 = arith.constant dense<0.000000e+00> : vector<8x384xf32>
    %40 = tpu.matmul %38, %6, %cst_14 {dimension_numbers = #tpu.dot_dimension_numbers<[1], [0], [0], [1], [0, 0, 1, 1], [], []>} : vector<8x128xf32>, vector<128x384xf32>, vector<8x384xf32> -> vector<8x384xf32>
    %41 = vector.extract_strided_slice %39 {offsets = [0, 0], sizes = [8, 128], strides = [1, 1]} : vector<8x384xf32> to vector<8x128xf32>
    %42 = vector.extract_strided_slice %40 {offsets = [0, 0], sizes = [8, 128], strides = [1, 1]} : vector<8x384xf32> to vector<8x128xf32>
    %43 = arith.addf %41, %42 : vector<8x128xf32>
    %44 = arith.negf %43 : vector<8x128xf32>
    %45 = math.exp %44 : vector<8x128xf32>
    %cst_15 = arith.constant 1.000000e+00 : f32
    %46 = vector.broadcast %cst_15 : f32 to vector<8x128xf32>
    %47 = arith.addf %46, %45 : vector<8x128xf32>
    %48 = arith.divf %46, %47 : vector<8x128xf32>
    %49 = vector.extract_strided_slice %39 {offsets = [0, 128], sizes = [8, 128], strides = [1, 1]} : vector<8x384xf32> to vector<8x128xf32>
    %50 = vector.extract_strided_slice %40 {offsets = [0, 128], sizes = [8, 128], strides = [1, 1]} : vector<8x384xf32> to vector<8x128xf32>
    %51 = arith.addf %49, %50 : vector<8x128xf32>
    %52 = arith.negf %51 : vector<8x128xf32>
    %53 = math.exp %52 : vector<8x128xf32>
    %cst_16 = arith.constant 1.000000e+00 : f32
    %54 = vector.broadcast %cst_16 : f32 to vector<8x128xf32>
    %55 = arith.addf %54, %53 : vector<8x128xf32>
    %56 = arith.divf %54, %55 : vector<8x128xf32>
    %57 = vector.extract_strided_slice %39 {offsets = [0, 256], sizes = [8, 128], strides = [1, 1]} : vector<8x384xf32> to vector<8x128xf32>
    %58 = vector.extract_strided_slice %40 {offsets = [0, 256], sizes = [8, 128], strides = [1, 1]} : vector<8x384xf32> to vector<8x128xf32>
    %59 = vector.broadcast %7 : vector<1x128xf32> to vector<8x128xf32>
    %60 = arith.addf %58, %59 : vector<8x128xf32>
    %61 = arith.mulf %48, %60 : vector<8x128xf32>
    %62 = arith.addf %57, %61 : vector<8x128xf32>
    %63 = math.tanh %62 : vector<8x128xf32>
    %cst_17 = arith.constant 1.000000e+00 : f32
    %64 = vector.broadcast %cst_17 : f32 to vector<8x128xf32>
    %65 = arith.subf %64, %56 : vector<8x128xf32>
    %66 = arith.mulf %65, %63 : vector<8x128xf32>
    %67 = arith.mulf %56, %38 : vector<8x128xf32>
    %68 = arith.addf %66, %67 : vector<8x128xf32>
    %69 = vector.extract_strided_slice %5 {offsets = [16, 0], sizes = [8, 384], strides = [1, 1]} : vector<64x384xf32> to vector<8x384xf32>
    %cst_18 = arith.constant dense<0.000000e+00> : vector<8x384xf32>
    %70 = tpu.matmul %68, %6, %cst_18 {dimension_numbers = #tpu.dot_dimension_numbers<[1], [0], [0], [1], [0, 0, 1, 1], [], []>} : vector<8x128xf32>, vector<128x384xf32>, vector<8x384xf32> -> vector<8x384xf32>
    %71 = vector.extract_strided_slice %69 {offsets = [0, 0], sizes = [8, 128], strides = [1, 1]} : vector<8x384xf32> to vector<8x128xf32>
    %72 = vector.extract_strided_slice %70 {offsets = [0, 0], sizes = [8, 128], strides = [1, 1]} : vector<8x384xf32> to vector<8x128xf32>
    %73 = arith.addf %71, %72 : vector<8x128xf32>
    %74 = arith.negf %73 : vector<8x128xf32>
    %75 = math.exp %74 : vector<8x128xf32>
    %cst_19 = arith.constant 1.000000e+00 : f32
    %76 = vector.broadcast %cst_19 : f32 to vector<8x128xf32>
    %77 = arith.addf %76, %75 : vector<8x128xf32>
    %78 = arith.divf %76, %77 : vector<8x128xf32>
    %79 = vector.extract_strided_slice %69 {offsets = [0, 128], sizes = [8, 128], strides = [1, 1]} : vector<8x384xf32> to vector<8x128xf32>
    %80 = vector.extract_strided_slice %70 {offsets = [0, 128], sizes = [8, 128], strides = [1, 1]} : vector<8x384xf32> to vector<8x128xf32>
    %81 = arith.addf %79, %80 : vector<8x128xf32>
    %82 = arith.negf %81 : vector<8x128xf32>
    %83 = math.exp %82 : vector<8x128xf32>
    %cst_20 = arith.constant 1.000000e+00 : f32
    %84 = vector.broadcast %cst_20 : f32 to vector<8x128xf32>
    %85 = arith.addf %84, %83 : vector<8x128xf32>
    %86 = arith.divf %84, %85 : vector<8x128xf32>
    %87 = vector.extract_strided_slice %69 {offsets = [0, 256], sizes = [8, 128], strides = [1, 1]} : vector<8x384xf32> to vector<8x128xf32>
    %88 = vector.extract_strided_slice %70 {offsets = [0, 256], sizes = [8, 128], strides = [1, 1]} : vector<8x384xf32> to vector<8x128xf32>
    %89 = vector.broadcast %7 : vector<1x128xf32> to vector<8x128xf32>
    %90 = arith.addf %88, %89 : vector<8x128xf32>
    %91 = arith.mulf %78, %90 : vector<8x128xf32>
    %92 = arith.addf %87, %91 : vector<8x128xf32>
    %93 = math.tanh %92 : vector<8x128xf32>
    %cst_21 = arith.constant 1.000000e+00 : f32
    %94 = vector.broadcast %cst_21 : f32 to vector<8x128xf32>
    %95 = arith.subf %94, %86 : vector<8x128xf32>
    %96 = arith.mulf %95, %93 : vector<8x128xf32>
    %97 = arith.mulf %86, %68 : vector<8x128xf32>
    %98 = arith.addf %96, %97 : vector<8x128xf32>
    %99 = vector.extract_strided_slice %5 {offsets = [24, 0], sizes = [8, 384], strides = [1, 1]} : vector<64x384xf32> to vector<8x384xf32>
    %cst_22 = arith.constant dense<0.000000e+00> : vector<8x384xf32>
    %100 = tpu.matmul %98, %6, %cst_22 {dimension_numbers = #tpu.dot_dimension_numbers<[1], [0], [0], [1], [0, 0, 1, 1], [], []>} : vector<8x128xf32>, vector<128x384xf32>, vector<8x384xf32> -> vector<8x384xf32>
    %101 = vector.extract_strided_slice %99 {offsets = [0, 0], sizes = [8, 128], strides = [1, 1]} : vector<8x384xf32> to vector<8x128xf32>
    %102 = vector.extract_strided_slice %100 {offsets = [0, 0], sizes = [8, 128], strides = [1, 1]} : vector<8x384xf32> to vector<8x128xf32>
    %103 = arith.addf %101, %102 : vector<8x128xf32>
    %104 = arith.negf %103 : vector<8x128xf32>
    %105 = math.exp %104 : vector<8x128xf32>
    %cst_23 = arith.constant 1.000000e+00 : f32
    %106 = vector.broadcast %cst_23 : f32 to vector<8x128xf32>
    %107 = arith.addf %106, %105 : vector<8x128xf32>
    %108 = arith.divf %106, %107 : vector<8x128xf32>
    %109 = vector.extract_strided_slice %99 {offsets = [0, 128], sizes = [8, 128], strides = [1, 1]} : vector<8x384xf32> to vector<8x128xf32>
    %110 = vector.extract_strided_slice %100 {offsets = [0, 128], sizes = [8, 128], strides = [1, 1]} : vector<8x384xf32> to vector<8x128xf32>
    %111 = arith.addf %109, %110 : vector<8x128xf32>
    %112 = arith.negf %111 : vector<8x128xf32>
    %113 = math.exp %112 : vector<8x128xf32>
    %cst_24 = arith.constant 1.000000e+00 : f32
    %114 = vector.broadcast %cst_24 : f32 to vector<8x128xf32>
    %115 = arith.addf %114, %113 : vector<8x128xf32>
    %116 = arith.divf %114, %115 : vector<8x128xf32>
    %117 = vector.extract_strided_slice %99 {offsets = [0, 256], sizes = [8, 128], strides = [1, 1]} : vector<8x384xf32> to vector<8x128xf32>
    %118 = vector.extract_strided_slice %100 {offsets = [0, 256], sizes = [8, 128], strides = [1, 1]} : vector<8x384xf32> to vector<8x128xf32>
    %119 = vector.broadcast %7 : vector<1x128xf32> to vector<8x128xf32>
    %120 = arith.addf %118, %119 : vector<8x128xf32>
    %121 = arith.mulf %108, %120 : vector<8x128xf32>
    %122 = arith.addf %117, %121 : vector<8x128xf32>
    %123 = math.tanh %122 : vector<8x128xf32>
    %cst_25 = arith.constant 1.000000e+00 : f32
    %124 = vector.broadcast %cst_25 : f32 to vector<8x128xf32>
    %125 = arith.subf %124, %116 : vector<8x128xf32>
    %126 = arith.mulf %125, %123 : vector<8x128xf32>
    %127 = arith.mulf %116, %98 : vector<8x128xf32>
    %128 = arith.addf %126, %127 : vector<8x128xf32>
    %129 = vector.extract_strided_slice %5 {offsets = [32, 0], sizes = [8, 384], strides = [1, 1]} : vector<64x384xf32> to vector<8x384xf32>
    %cst_26 = arith.constant dense<0.000000e+00> : vector<8x384xf32>
    %130 = tpu.matmul %128, %6, %cst_26 {dimension_numbers = #tpu.dot_dimension_numbers<[1], [0], [0], [1], [0, 0, 1, 1], [], []>} : vector<8x128xf32>, vector<128x384xf32>, vector<8x384xf32> -> vector<8x384xf32>
    %131 = vector.extract_strided_slice %129 {offsets = [0, 0], sizes = [8, 128], strides = [1, 1]} : vector<8x384xf32> to vector<8x128xf32>
    %132 = vector.extract_strided_slice %130 {offsets = [0, 0], sizes = [8, 128], strides = [1, 1]} : vector<8x384xf32> to vector<8x128xf32>
    %133 = arith.addf %131, %132 : vector<8x128xf32>
    %134 = arith.negf %133 : vector<8x128xf32>
    %135 = math.exp %134 : vector<8x128xf32>
    %cst_27 = arith.constant 1.000000e+00 : f32
    %136 = vector.broadcast %cst_27 : f32 to vector<8x128xf32>
    %137 = arith.addf %136, %135 : vector<8x128xf32>
    %138 = arith.divf %136, %137 : vector<8x128xf32>
    %139 = vector.extract_strided_slice %129 {offsets = [0, 128], sizes = [8, 128], strides = [1, 1]} : vector<8x384xf32> to vector<8x128xf32>
    %140 = vector.extract_strided_slice %130 {offsets = [0, 128], sizes = [8, 128], strides = [1, 1]} : vector<8x384xf32> to vector<8x128xf32>
    %141 = arith.addf %139, %140 : vector<8x128xf32>
    %142 = arith.negf %141 : vector<8x128xf32>
    %143 = math.exp %142 : vector<8x128xf32>
    %cst_28 = arith.constant 1.000000e+00 : f32
    %144 = vector.broadcast %cst_28 : f32 to vector<8x128xf32>
    %145 = arith.addf %144, %143 : vector<8x128xf32>
    %146 = arith.divf %144, %145 : vector<8x128xf32>
    %147 = vector.extract_strided_slice %129 {offsets = [0, 256], sizes = [8, 128], strides = [1, 1]} : vector<8x384xf32> to vector<8x128xf32>
    %148 = vector.extract_strided_slice %130 {offsets = [0, 256], sizes = [8, 128], strides = [1, 1]} : vector<8x384xf32> to vector<8x128xf32>
    %149 = vector.broadcast %7 : vector<1x128xf32> to vector<8x128xf32>
    %150 = arith.addf %148, %149 : vector<8x128xf32>
    %151 = arith.mulf %138, %150 : vector<8x128xf32>
    %152 = arith.addf %147, %151 : vector<8x128xf32>
    %153 = math.tanh %152 : vector<8x128xf32>
    %cst_29 = arith.constant 1.000000e+00 : f32
    %154 = vector.broadcast %cst_29 : f32 to vector<8x128xf32>
    %155 = arith.subf %154, %146 : vector<8x128xf32>
    %156 = arith.mulf %155, %153 : vector<8x128xf32>
    %157 = arith.mulf %146, %128 : vector<8x128xf32>
    %158 = arith.addf %156, %157 : vector<8x128xf32>
    %159 = vector.extract_strided_slice %5 {offsets = [40, 0], sizes = [8, 384], strides = [1, 1]} : vector<64x384xf32> to vector<8x384xf32>
    %cst_30 = arith.constant dense<0.000000e+00> : vector<8x384xf32>
    %160 = tpu.matmul %158, %6, %cst_30 {dimension_numbers = #tpu.dot_dimension_numbers<[1], [0], [0], [1], [0, 0, 1, 1], [], []>} : vector<8x128xf32>, vector<128x384xf32>, vector<8x384xf32> -> vector<8x384xf32>
    %161 = vector.extract_strided_slice %159 {offsets = [0, 0], sizes = [8, 128], strides = [1, 1]} : vector<8x384xf32> to vector<8x128xf32>
    %162 = vector.extract_strided_slice %160 {offsets = [0, 0], sizes = [8, 128], strides = [1, 1]} : vector<8x384xf32> to vector<8x128xf32>
    %163 = arith.addf %161, %162 : vector<8x128xf32>
    %164 = arith.negf %163 : vector<8x128xf32>
    %165 = math.exp %164 : vector<8x128xf32>
    %cst_31 = arith.constant 1.000000e+00 : f32
    %166 = vector.broadcast %cst_31 : f32 to vector<8x128xf32>
    %167 = arith.addf %166, %165 : vector<8x128xf32>
    %168 = arith.divf %166, %167 : vector<8x128xf32>
    %169 = vector.extract_strided_slice %159 {offsets = [0, 128], sizes = [8, 128], strides = [1, 1]} : vector<8x384xf32> to vector<8x128xf32>
    %170 = vector.extract_strided_slice %160 {offsets = [0, 128], sizes = [8, 128], strides = [1, 1]} : vector<8x384xf32> to vector<8x128xf32>
    %171 = arith.addf %169, %170 : vector<8x128xf32>
    %172 = arith.negf %171 : vector<8x128xf32>
    %173 = math.exp %172 : vector<8x128xf32>
    %cst_32 = arith.constant 1.000000e+00 : f32
    %174 = vector.broadcast %cst_32 : f32 to vector<8x128xf32>
    %175 = arith.addf %174, %173 : vector<8x128xf32>
    %176 = arith.divf %174, %175 : vector<8x128xf32>
    %177 = vector.extract_strided_slice %159 {offsets = [0, 256], sizes = [8, 128], strides = [1, 1]} : vector<8x384xf32> to vector<8x128xf32>
    %178 = vector.extract_strided_slice %160 {offsets = [0, 256], sizes = [8, 128], strides = [1, 1]} : vector<8x384xf32> to vector<8x128xf32>
    %179 = vector.broadcast %7 : vector<1x128xf32> to vector<8x128xf32>
    %180 = arith.addf %178, %179 : vector<8x128xf32>
    %181 = arith.mulf %168, %180 : vector<8x128xf32>
    %182 = arith.addf %177, %181 : vector<8x128xf32>
    %183 = math.tanh %182 : vector<8x128xf32>
    %cst_33 = arith.constant 1.000000e+00 : f32
    %184 = vector.broadcast %cst_33 : f32 to vector<8x128xf32>
    %185 = arith.subf %184, %176 : vector<8x128xf32>
    %186 = arith.mulf %185, %183 : vector<8x128xf32>
    %187 = arith.mulf %176, %158 : vector<8x128xf32>
    %188 = arith.addf %186, %187 : vector<8x128xf32>
    %189 = vector.extract_strided_slice %5 {offsets = [48, 0], sizes = [8, 384], strides = [1, 1]} : vector<64x384xf32> to vector<8x384xf32>
    %cst_34 = arith.constant dense<0.000000e+00> : vector<8x384xf32>
    %190 = tpu.matmul %188, %6, %cst_34 {dimension_numbers = #tpu.dot_dimension_numbers<[1], [0], [0], [1], [0, 0, 1, 1], [], []>} : vector<8x128xf32>, vector<128x384xf32>, vector<8x384xf32> -> vector<8x384xf32>
    %191 = vector.extract_strided_slice %189 {offsets = [0, 0], sizes = [8, 128], strides = [1, 1]} : vector<8x384xf32> to vector<8x128xf32>
    %192 = vector.extract_strided_slice %190 {offsets = [0, 0], sizes = [8, 128], strides = [1, 1]} : vector<8x384xf32> to vector<8x128xf32>
    %193 = arith.addf %191, %192 : vector<8x128xf32>
    %194 = arith.negf %193 : vector<8x128xf32>
    %195 = math.exp %194 : vector<8x128xf32>
    %cst_35 = arith.constant 1.000000e+00 : f32
    %196 = vector.broadcast %cst_35 : f32 to vector<8x128xf32>
    %197 = arith.addf %196, %195 : vector<8x128xf32>
    %198 = arith.divf %196, %197 : vector<8x128xf32>
    %199 = vector.extract_strided_slice %189 {offsets = [0, 128], sizes = [8, 128], strides = [1, 1]} : vector<8x384xf32> to vector<8x128xf32>
    %200 = vector.extract_strided_slice %190 {offsets = [0, 128], sizes = [8, 128], strides = [1, 1]} : vector<8x384xf32> to vector<8x128xf32>
    %201 = arith.addf %199, %200 : vector<8x128xf32>
    %202 = arith.negf %201 : vector<8x128xf32>
    %203 = math.exp %202 : vector<8x128xf32>
    %cst_36 = arith.constant 1.000000e+00 : f32
    %204 = vector.broadcast %cst_36 : f32 to vector<8x128xf32>
    %205 = arith.addf %204, %203 : vector<8x128xf32>
    %206 = arith.divf %204, %205 : vector<8x128xf32>
    %207 = vector.extract_strided_slice %189 {offsets = [0, 256], sizes = [8, 128], strides = [1, 1]} : vector<8x384xf32> to vector<8x128xf32>
    %208 = vector.extract_strided_slice %190 {offsets = [0, 256], sizes = [8, 128], strides = [1, 1]} : vector<8x384xf32> to vector<8x128xf32>
    %209 = vector.broadcast %7 : vector<1x128xf32> to vector<8x128xf32>
    %210 = arith.addf %208, %209 : vector<8x128xf32>
    %211 = arith.mulf %198, %210 : vector<8x128xf32>
    %212 = arith.addf %207, %211 : vector<8x128xf32>
    %213 = math.tanh %212 : vector<8x128xf32>
    %cst_37 = arith.constant 1.000000e+00 : f32
    %214 = vector.broadcast %cst_37 : f32 to vector<8x128xf32>
    %215 = arith.subf %214, %206 : vector<8x128xf32>
    %216 = arith.mulf %215, %213 : vector<8x128xf32>
    %217 = arith.mulf %206, %188 : vector<8x128xf32>
    %218 = arith.addf %216, %217 : vector<8x128xf32>
    %219 = vector.extract_strided_slice %5 {offsets = [56, 0], sizes = [8, 384], strides = [1, 1]} : vector<64x384xf32> to vector<8x384xf32>
    %cst_38 = arith.constant dense<0.000000e+00> : vector<8x384xf32>
    %220 = tpu.matmul %218, %6, %cst_38 {dimension_numbers = #tpu.dot_dimension_numbers<[1], [0], [0], [1], [0, 0, 1, 1], [], []>} : vector<8x128xf32>, vector<128x384xf32>, vector<8x384xf32> -> vector<8x384xf32>
    %221 = vector.extract_strided_slice %219 {offsets = [0, 0], sizes = [8, 128], strides = [1, 1]} : vector<8x384xf32> to vector<8x128xf32>
    %222 = vector.extract_strided_slice %220 {offsets = [0, 0], sizes = [8, 128], strides = [1, 1]} : vector<8x384xf32> to vector<8x128xf32>
    %223 = arith.addf %221, %222 : vector<8x128xf32>
    %224 = arith.negf %223 : vector<8x128xf32>
    %225 = math.exp %224 : vector<8x128xf32>
    %cst_39 = arith.constant 1.000000e+00 : f32
    %226 = vector.broadcast %cst_39 : f32 to vector<8x128xf32>
    %227 = arith.addf %226, %225 : vector<8x128xf32>
    %228 = arith.divf %226, %227 : vector<8x128xf32>
    %229 = vector.extract_strided_slice %219 {offsets = [0, 128], sizes = [8, 128], strides = [1, 1]} : vector<8x384xf32> to vector<8x128xf32>
    %230 = vector.extract_strided_slice %220 {offsets = [0, 128], sizes = [8, 128], strides = [1, 1]} : vector<8x384xf32> to vector<8x128xf32>
    %231 = arith.addf %229, %230 : vector<8x128xf32>
    %232 = arith.negf %231 : vector<8x128xf32>
    %233 = math.exp %232 : vector<8x128xf32>
    %cst_40 = arith.constant 1.000000e+00 : f32
    %234 = vector.broadcast %cst_40 : f32 to vector<8x128xf32>
    %235 = arith.addf %234, %233 : vector<8x128xf32>
    %236 = arith.divf %234, %235 : vector<8x128xf32>
    %237 = vector.extract_strided_slice %219 {offsets = [0, 256], sizes = [8, 128], strides = [1, 1]} : vector<8x384xf32> to vector<8x128xf32>
    %238 = vector.extract_strided_slice %220 {offsets = [0, 256], sizes = [8, 128], strides = [1, 1]} : vector<8x384xf32> to vector<8x128xf32>
    %239 = vector.broadcast %7 : vector<1x128xf32> to vector<8x128xf32>
    %240 = arith.addf %238, %239 : vector<8x128xf32>
    %241 = arith.mulf %228, %240 : vector<8x128xf32>
    %242 = arith.addf %237, %241 : vector<8x128xf32>
    %243 = math.tanh %242 : vector<8x128xf32>
    %cst_41 = arith.constant 1.000000e+00 : f32
    %244 = vector.broadcast %cst_41 : f32 to vector<8x128xf32>
    %245 = arith.subf %244, %236 : vector<8x128xf32>
    %246 = arith.mulf %245, %243 : vector<8x128xf32>
    %247 = arith.mulf %236, %218 : vector<8x128xf32>
    %248 = arith.addf %246, %247 : vector<8x128xf32>
    %c0_42 = arith.constant 0 : index
    %c0_43 = arith.constant 0 : index
    %249 = vector.load %arg5[%c0_42, %c0_43] : memref<128x128xf32, #tpu.memory_space<vmem>>, vector<128x128xf32>
    %cst_44 = arith.constant dense<0.000000e+00> : vector<8x128xf32>
    %250 = tpu.matmul %248, %249, %cst_44 {dimension_numbers = #tpu.dot_dimension_numbers<[1], [0], [0], [1], [0, 0, 1, 1], [], []>} : vector<8x128xf32>, vector<128x128xf32>, vector<8x128xf32> -> vector<8x128xf32>
    %c0_45 = arith.constant 0 : index
    %c0_46 = arith.constant 0 : index
    %251 = vector.load %arg6[%c0_45, %c0_46] : memref<1x128xf32, #tpu.memory_space<vmem>>, vector<1x128xf32>
    %252 = vector.broadcast %251 : vector<1x128xf32> to vector<8x128xf32>
    %253 = arith.addf %250, %252 : vector<8x128xf32>
    %c0_47 = arith.constant 0 : index
    %c0_48 = arith.constant 0 : index
    %254 = vector.load %arg7[%c0_47, %c0_48] : memref<8x128xf32, #tpu.memory_space<vmem>>, vector<8x128xf32>
    tpu.vector_store %arg7[%c0_47, %c0_48], %253 {strides = array<i32>} : memref<8x128xf32, #tpu.memory_space<vmem>>, vector<8x128xf32>,
    return
  }
}

</mosaic_0001>

<llo_original>
// kernel: gru_net_forward.1
$region0: #{gru_net_forward.1}
  #allocation0 [shape = 'u32[]', space=smem, size = 0x4, offset = 0x4, fixed_abs, tag = 'smem constant byte address 0x4 - core index']
  #allocation1 [shape = 'u32[144,128]{1,0:T(1,128)}', space=vmem, size = 0x12000, scoped, tag = 'internal scratch']
  %s0 = inlined_call_operand.vmem [shape: f32[64,128], index: 0, kind: input, shape index: {}]
  %s1 = inlined_call_operand.vmem [shape: f32[128,384], index: 1, kind: input, shape index: {}]
  %s2 = inlined_call_operand.vmem [shape: f32[1,384], index: 2, kind: input, shape index: {}]
  %s3 = inlined_call_operand.vmem [shape: f32[128,384], index: 3, kind: input, shape index: {}]
  %s4 = inlined_call_operand.vmem [shape: f32[1,128], index: 4, kind: input, shape index: {}]
  %s5 = inlined_call_operand.vmem [shape: f32[128,128], index: 5, kind: input, shape index: {}]
  %s6 = inlined_call_operand.vmem [shape: f32[1,128], index: 6, kind: input, shape index: {}]
  %s7 = inlined_call_operand.vmem [shape: f32[8,128], index: 7, kind: output, shape index: {}]
  %s8 = sld [smem:[#allocation0]]
  $region38: #{gru_net_forward.1} parent=0
    _
  %s10 = ssub.s32 1, %s8
  %s11 = scalar_select 0, %s10, %s8
  // Predicated region
  $region2: #{gru_net_forward.1} parent=0 // pred_check
    _
  $region3: #{gru_net_forward.1} parent=0 // pred_check_branch
    %13 = sbr.rel (0) target = $region5
  $region4: #{gru_net_forward.1} parent=0 // pred_region
    _
  $region5: #{gru_net_forward.1} parent=0 // pred_fallthru
    _
  // Predicated region
  $region6: #{gru_net_forward.1} parent=0 // pred_check
    _
  $region7: #{gru_net_forward.1} parent=0 // pred_check_branch
    %15 = sbr.rel (0) target = $region9
  $region8: #{gru_net_forward.1} parent=0 // pred_region
    _
  $region9: #{gru_net_forward.1} parent=0 // pred_fallthru
    _
  // Predicated region
  $region10: #{gru_net_forward.1} parent=0 // pred_check
    _
  $region11: #{gru_net_forward.1} parent=0 // pred_check_branch
    %17 = sbr.rel (0) target = $region13
  $region12: #{gru_net_forward.1} parent=0 // pred_region
    _
  $region13: #{gru_net_forward.1} parent=0 // pred_fallthru
    _
  // Predicated region
  $region14: #{gru_net_forward.1} parent=0 // pred_check
    _
  $region15: #{gru_net_forward.1} parent=0 // pred_check_branch
    %19 = sbr.rel (0) target = $region17
  $region16: #{gru_net_forward.1} parent=0 // pred_region
    _
  $region17: #{gru_net_forward.1} parent=0 // pred_fallthru
    _
  // Predicated region
  $region18: #{gru_net_forward.1} parent=0 // pred_check
    _
  $region19: #{gru_net_forward.1} parent=0 // pred_check_branch
    %21 = sbr.rel (0) target = $region21
  $region20: #{gru_net_forward.1} parent=0 // pred_region
    _
  $region21: #{gru_net_forward.1} parent=0 // pred_fallthru
    _
  // Predicated region
  $region22: #{gru_net_forward.1} parent=0 // pred_check
    _
  $region23: #{gru_net_forward.1} parent=0 // pred_check_branch
    %23 = sbr.rel (0) target = $region25
  $region24: #{gru_net_forward.1} parent=0 // pred_region
    _
  $region25: #{gru_net_forward.1} parent=0 // pred_fallthru
    _
  // Predicated region
  $region26: #{gru_net_forward.1} parent=0 // pred_check
    _
  $region27: #{gru_net_forward.1} parent=0 // pred_check_branch
    %25 = sbr.rel (0) target = $region29
  $region28: #{gru_net_forward.1} parent=0 // pred_region
    _
  $region29: #{gru_net_forward.1} parent=0 // pred_fallthru
    _
  %v26 = vld [vmem:[%s0] sm:$0xff]
  %v27 = vld [vmem:[%s0 + $0x8] sm:$0xff]
  %v28 = vld [vmem:[%s0 + $0x10] sm:$0xff]
  %v29 = vld [vmem:[%s0 + $0x18] sm:$0xff]
  %v30 = vld [vmem:[%s0 + $0x20] sm:$0xff]
  %v31 = vld [vmem:[%s0 + $0x28] sm:$0xff]
  %v32 = vld [vmem:[%s0 + $0x30] sm:$0xff]
  %v33 = vld [vmem:[%s0 + $0x38] sm:$0xff]
  %v34 = vld [vmem:[%s1] sm:$0xff]
  %v35 = vld [vmem:[%s1 + $0x8] sm:$0xff]
  %v36 = vld [vmem:[%s1 + $0x10] sm:$0xff]
  %v37 = vld [vmem:[%s1 + $0x18] sm:$0xff]
  %v38 = vld [vmem:[%s1 + $0x20] sm:$0xff]
  %v39 = vld [vmem:[%s1 + $0x28] sm:$0xff]
  %v40 = vld [vmem:[%s1 + $0x30] sm:$0xff]
  %v41 = vld [vmem:[%s1 + $0x38] sm:$0xff]
  %v42 = vld [vmem:[%s1 + $0x40] sm:$0xff]
  %v43 = vld [vmem:[%s1 + $0x48] sm:$0xff]
  %v44 = vld [vmem:[%s1 + $0x50] sm:$0xff]
  %v45 = vld [vmem:[%s1 + $0x58] sm:$0xff]
  %v46 = vld [vmem:[%s1 + $0x60] sm:$0xff]
  %v47 = vld [vmem:[%s1 + $0x68] sm:$0xff]
  %v48 = vld [vmem:[%s1 + $0x70] sm:$0xff]
  %v49 = vld [vmem:[%s1 + $0x78] sm:$0xff]
  %v50 = vld [vmem:[%s1 + $0x80] sm:$0xff]
  %v51 = vld [vmem:[%s1 + $0x88] sm:$0xff]
  %v52 = vld [vmem:[%s1 + $0x90] sm:$0xff]
  %v53 = vld [vmem:[%s1 + $0x98] sm:$0xff]
  %v54 = vld [vmem:[%s1 + $0xa0] sm:$0xff]
  %v55 = vld [vmem:[%s1 + $0xa8] sm:$0xff]
  %v56 = vld [vmem:[%s1 + $0xb0] sm:$0xff]
  %v57 = vld [vmem:[%s1 + $0xb8] sm:$0xff]
  %v58 = vld [vmem:[%s1 + $0xc0] sm:$0xff]
  %v59 = vld [vmem:[%s1 + $0xc8] sm:$0xff]
  %v60 = vld [vmem:[%s1 + $0xd0] sm:$0xff]
  %v61 = vld [vmem:[%s1 + $0xd8] sm:$0xff]
  %v62 = vld [vmem:[%s1 + $0xe0] sm:$0xff]
  %v63 = vld [vmem:[%s1 + $0xe8] sm:$0xff]
  %v64 = vld [vmem:[%s1 + $0xf0] sm:$0xff]
  %v65 = vld [vmem:[%s1 + $0xf8] sm:$0xff]
  %v66 = vld [vmem:[%s1 + $0x100] sm:$0xff]
  %v67 = vld [vmem:[%s1 + $0x108] sm:$0xff]
  %v68 = vld [vmem:[%s1 + $0x110] sm:$0xff]
  %v69 = vld [vmem:[%s1 + $0x118] sm:$0xff]
  %v70 = vld [vmem:[%s1 + $0x120] sm:$0xff]
  %v71 = vld [vmem:[%s1 + $0x128] sm:$0xff]
  %v72 = vld [vmem:[%s1 + $0x130] sm:$0xff]
  %v73 = vld [vmem:[%s1 + $0x138] sm:$0xff]
  %v74 = vld [vmem:[%s1 + $0x140] sm:$0xff]
  %v75 = vld [vmem:[%s1 + $0x148] sm:$0xff]
  %v76 = vld [vmem:[%s1 + $0x150] sm:$0xff]
  %v77 = vld [vmem:[%s1 + $0x158] sm:$0xff]
  %v78 = vld [vmem:[%s1 + $0x160] sm:$0xff]
  %v79 = vld [vmem:[%s1 + $0x168] sm:$0xff]
  %v80 = vld [vmem:[%s1 + $0x170] sm:$0xff]
  %v81 = vld [vmem:[%s1 + $0x178] sm:$0xff]
  %v82 = vld [vmem:[%s2] sm:$0x7]
  %v84 = vlaneseq
  %v85 = vshrl.u32 %v84, 7
  %v86 = vsub.s32 0, %v85
  %v87 = vrot.slane %v82, %v86
  %v88 = vlaneseq
  %v89 = vshrl.u32 %v88, 7
  %v90 = vsub.s32 1, %v89
  %v91 = vrot.slane %v82, %v90
  %v92 = vlaneseq
  %v93 = vshrl.u32 %v92, 7
  %v94 = vsub.s32 2, %v93
  %v95 = vrot.slane %v82, %v94
  %99 = vmatprep.subr.mxu0 %v80
  %100 = vmatpush1.msra.mxu0 %v79
  %101 = vmatprep.subr.mxu0 %v77
  %102 = vmatpush1.msra.mxu0 %v76
  %103 = vmatprep.subr.mxu0 %v74
  %104 = vmatpush1.msra.mxu0 %v73
  %105 = vmatprep.subr.mxu0 %v71
  %106 = vmatpush1.msra.mxu0 %v70
  %107 = vmatprep.subr.mxu0 %v68
  %108 = vmatpush1.msra.mxu0 %v67
  %109 = vmatprep.subr.mxu0 %v65
  %110 = vmatpush1.msra.mxu0 %v64
  %111 = vmatprep.subr.mxu0 %v62
  %112 = vmatpush1.msra.mxu0 %v61
  %113 = vmatprep.subr.mxu0 %v59
  %114 = vmatpush1.msra.mxu0 %v58
  %115 = vmatprep.subr.mxu0 %v56
  %116 = vmatpush1.msra.mxu0 %v55
  %117 = vmatprep.subr.mxu0 %v53
  %118 = vmatpush1.msra.mxu0 %v52
  %119 = vmatprep.subr.mxu0 %v50
  %120 = vmatpush1.msra.mxu0 %v49
  %121 = vmatprep.subr.mxu0 %v47
  %122 = vmatpush1.msra.mxu0 %v46
  %123 = vmatprep.subr.mxu0 %v44
  %124 = vmatpush1.msra.mxu0 %v43
  %125 = vmatprep.subr.mxu0 %v41
  %126 = vmatpush1.msra.mxu0 %v40
  %127 = vmatprep.subr.mxu0 %v38
  %128 = vmatpush1.msra.mxu0 %v37
  %129 = vmatprep.subr.mxu0 %v35
  %130 = vmatpush1.msra.mxu0 %v34
  %131 = vmatprep.subr.mxu0 0.0
  %132 = vmatpush2.msra.mxu0 0.0
  %133 = vmatprep.subr.mxu0 0.0
  %134 = vmatpush2.msra.mxu0 0.0
  %135 = vmatprep.subr.mxu0 0.0
  %136 = vmatpush2.msra.mxu0 0.0
  %137 = vmatprep.subr.mxu0 0.0
  %138 = vmatpush2.msra.mxu0 0.0
  %139 = vmatprep.subr.mxu0 0.0
  %140 = vmatpush2.msra.mxu0 0.0
  %141 = vmatprep.subr.mxu0 0.0
  %142 = vmatpush2.msra.mxu0 0.0
  %143 = vmatprep.subr.mxu0 0.0
  %144 = vmatpush2.msra.mxu0 0.0
  %145 = vmatprep.subr.mxu0 0.0
  %146 = vmatpush2.msra.mxu0 0.0
  %147 = vmatprep.subr.mxu0 0.0
  %148 = vmatpush2.msra.mxu0 0.0
  %149 = vmatprep.subr.mxu0 0.0
  %150 = vmatpush2.msra.mxu0 0.0
  %151 = vmatprep.subr.mxu0 0.0
  %152 = vmatpush2.msra.mxu0 0.0
  %153 = vmatprep.subr.mxu0 0.0
  %154 = vmatpush2.msra.mxu0 0.0
  %155 = vmatprep.subr.mxu0 0.0
  %156 = vmatpush2.msra.mxu0 0.0
  %157 = vmatprep.subr.mxu0 0.0
  %158 = vmatpush2.msra.mxu0 0.0
  %159 = vmatprep.subr.mxu0 0.0
  %160 = vmatpush2.msra.mxu0 0.0
  %161 = vmatprep.subr.mxu0 0.0
  %162 = vmatpush2.msra.mxu0 0.0
  %163 = vmatprep.mubr.f32.mxu0 0.0
  %164 = vmatmul.mubr.f32.gmra.mxu0 %v26
  %v165 = vpop.f32.mrf.mxu0
  %v166 = vadd.f32 %v87, %v165
  %v167 = vpop.f32.mrf.mxu0
  %v168 = vadd.f32 %v91, %v167
  %169 = vmatprep.mubr.f32.mxu0 0.0
  %170 = vmatmul.mubr.f32.gmra.mxu0 %v27
  %v171 = vpop.f32.mrf.mxu0
  %v172 = vadd.f32 %v87, %v171
  %v173 = vpop.f32.mrf.mxu0
  %v174 = vadd.f32 %v91, %v173
  %175 = vmatprep.mubr.f32.mxu0 0.0
  %176 = vmatmul.mubr.f32.gmra.mxu0 %v28
  %v177 = vpop.f32.mrf.mxu0
  %v178 = vadd.f32 %v87, %v177
  %v179 = vpop.f32.mrf.mxu0
  %v180 = vadd.f32 %v91, %v179
  %181 = vmatprep.mubr.f32.mxu0 0.0
  %182 = vmatmul.mubr.f32.gmra.mxu0 %v29
  %v183 = vpop.f32.mrf.mxu0
  %v184 = vadd.f32 %v87, %v183
  %v185 = vpop.f32.mrf.mxu0
  %v186 = vadd.f32 %v91, %v185
  %187 = vmatprep.mubr.f32.mxu0 0.0
  %188 = vmatmul.mubr.f32.gmra.mxu0 %v30
  %v189 = vpop.f32.mrf.mxu0
  %v190 = vadd.f32 %v87, %v189
  %v191 = vpop.f32.mrf.mxu0
  %v192 = vadd.f32 %v91, %v191
  %193 = vmatprep.mubr.f32.mxu0 0.0
  %194 = vmatmul.mubr.f32.gmra.mxu0 %v31
  %v195 = vpop.f32.mrf.mxu0
  %v196 = vadd.f32 %v87, %v195
  %v197 = vpop.f32.mrf.mxu0
  %v198 = vadd.f32 %v91, %v197
  %199 = vmatprep.mubr.f32.mxu0 0.0
  %200 = vmatmul.mubr.f32.gmra.mxu0 %v32
  %v201 = vpop.f32.mrf.mxu0
  %v202 = vadd.f32 %v87, %v201
  %v203 = vpop.f32.mrf.mxu0
  %v204 = vadd.f32 %v91, %v203
  %205 = vmatprep.mubr.f32.mxu0 0.0
  %206 = vmatmul.mubr.f32.gmra.mxu0 %v33
  %v207 = vpop.f32.mrf.mxu0
  %v208 = vadd.f32 %v87, %v207
  %v209 = vpop.f32.mrf.mxu0
  %v210 = vadd.f32 %v91, %v209
  %211 = vdwg.mxu0
  %212 = vmatprep.subr.mxu0 0.0
  %213 = vmatpush1.msra.mxu0 %v81
  %214 = vmatprep.subr.mxu0 0.0
  %215 = vmatpush1.msra.mxu0 %v78
  %216 = vmatprep.subr.mxu0 0.0
  %217 = vmatpush1.msra.mxu0 %v75
  %218 = vmatprep.subr.mxu0 0.0
  %219 = vmatpush1.msra.mxu0 %v72
  %220 = vmatprep.subr.mxu0 0.0
  %221 = vmatpush1.msra.mxu0 %v69
  %222 = vmatprep.subr.mxu0 0.0
  %223 = vmatpush1.msra.mxu0 %v66
  %224 = vmatprep.subr.mxu0 0.0
  %225 = vmatpush1.msra.mxu0 %v63
  %226 = vmatprep.subr.mxu0 0.0
  %227 = vmatpush1.msra.mxu0 %v60
  %228 = vmatprep.subr.mxu0 0.0
  %229 = vmatpush1.msra.mxu0 %v57
  %230 = vmatprep.subr.mxu0 0.0
  %231 = vmatpush1.msra.mxu0 %v54
  %232 = vmatprep.subr.mxu0 0.0
  %233 = vmatpush1.msra.mxu0 %v51
  %234 = vmatprep.subr.mxu0 0.0
  %235 = vmatpush1.msra.mxu0 %v48
  %236 = vmatprep.subr.mxu0 0.0
  %237 = vmatpush1.msra.mxu0 %v45
  %238 = vmatprep.subr.mxu0 0.0
  %239 = vmatpush1.msra.mxu0 %v42
  %240 = vmatprep.subr.mxu0 0.0
  %241 = vmatpush1.msra.mxu0 %v39
  %242 = vmatprep.subr.mxu0 0.0
  %243 = vmatpush1.msra.mxu0 %v36
  %244 = vmatprep.subr.mxu0 0.0
  %245 = vmatpush2.msra.mxu0 0.0
  %246 = vmatprep.subr.mxu0 0.0
  %247 = vmatpush2.msra.mxu0 0.0
  %248 = vmatprep.subr.mxu0 0.0
  %249 = vmatpush2.msra.mxu0 0.0
  %250 = vmatprep.subr.mxu0 0.0
  %251 = vmatpush2.msra.mxu0 0.0
  %252 = vmatprep.subr.mxu0 0.0
  %253 = vmatpush2.msra.mxu0 0.0
  %254 = vmatprep.subr.mxu0 0.0
  %255 = vmatpush2.msra.mxu0 0.0
  %256 = vmatprep.subr.mxu0 0.0
  %257 = vmatpush2.msra.mxu0 0.0
  %258 = vmatprep.subr.mxu0 0.0
  %259 = vmatpush2.msra.mxu0 0.0
  %260 = vmatprep.subr.mxu0 0.0
  %261 = vmatpush2.msra.mxu0 0.0
  %262 = vmatprep.subr.mxu0 0.0
  %263 = vmatpush2.msra.mxu0 0.0
  %264 = vmatprep.subr.mxu0 0.0
  %265 = vmatpush2.msra.mxu0 0.0
  %266 = vmatprep.subr.mxu0 0.0
  %267 = vmatpush2.msra.mxu0 0.0
  %268 = vmatprep.subr.mxu0 0.0
  %269 = vmatpush2.msra.mxu0 0.0
  %270 = vmatprep.subr.mxu0 0.0
  %271 = vmatpush2.msra.mxu0 0.0
  %272 = vmatprep.subr.mxu0 0.0
  %273 = vmatpush2.msra.mxu0 0.0
  %274 = vmatprep.subr.mxu0 0.0
  %275 = vmatpush2.msra.mxu0 0.0
  %276 = vmatprep.mubr.f32.mxu0 0.0
  %277 = vmatmul.mubr.f32.gmra.mxu0 %v26
  %v278 = vpop.f32.mrf.mxu0
  %v279 = vadd.f32 %v95, %v278
  %v280 = vpop.f32.mrf.mxu0
  %281 = vmatprep.mubr.f32.mxu0 0.0
  %282 = vmatmul.mubr.f32.gmra.mxu0 %v27
  %v283 = vpop.f32.mrf.mxu0
  %v284 = vadd.f32 %v95, %v283
  %v285 = vpop.f32.mrf.mxu0
  %286 = vmatprep.mubr.f32.mxu0 0.0
  %287 = vmatmul.mubr.f32.gmra.mxu0 %v28
  %v288 = vpop.f32.mrf.mxu0
  %v289 = vadd.f32 %v95, %v288
  %v290 = vpop.f32.mrf.mxu0
  %291 = vmatprep.mubr.f32.mxu0 0.0
  %292 = vmatmul.mubr.f32.gmra.mxu0 %v29
  %v293 = vpop.f32.mrf.mxu0
  %v294 = vadd.f32 %v95, %v293
  %v295 = vpop.f32.mrf.mxu0
  %296 = vmatprep.mubr.f32.mxu0 0.0
  %297 = vmatmul.mubr.f32.gmra.mxu0 %v30
  %v298 = vpop.f32.mrf.mxu0
  %v299 = vadd.f32 %v95, %v298
  %v300 = vpop.f32.mrf.mxu0
  %301 = vmatprep.mubr.f32.mxu0 0.0
  %302 = vmatmul.mubr.f32.gmra.mxu0 %v31
  %v303 = vpop.f32.mrf.mxu0
  %v304 = vadd.f32 %v95, %v303
  %v305 = vpop.f32.mrf.mxu0
  %306 = vmatprep.mubr.f32.mxu0 0.0
  %307 = vmatmul.mubr.f32.gmra.mxu0 %v32
  %v308 = vpop.f32.mrf.mxu0
  %v309 = vadd.f32 %v95, %v308
  %v310 = vpop.f32.mrf.mxu0
  %311 = vmatprep.mubr.f32.mxu0 0.0
  %312 = vmatmul.mubr.f32.gmra.mxu0 %v33
  %v313 = vpop.f32.mrf.mxu0
  %v314 = vadd.f32 %v95, %v313
  %v315 = vpop.f32.mrf.mxu0
  %316 = vdwg.mxu0
  %v317 = vld [vmem:[%s3] sm:$0xff]
  %v318 = vld [vmem:[%s3 + $0x8] sm:$0xff]
  %v319 = vld [vmem:[%s3 + $0x10] sm:$0xff]
  %v320 = vld [vmem:[%s3 + $0x18] sm:$0xff]
  %v321 = vld [vmem:[%s3 + $0x20] sm:$0xff]
  %v322 = vld [vmem:[%s3 + $0x28] sm:$0xff]
  %v323 = vld [vmem:[%s3 + $0x30] sm:$0xff]
  %v324 = vld [vmem:[%s3 + $0x38] sm:$0xff]
  %v325 = vld [vmem:[%s3 + $0x40] sm:$0xff]
  %v326 = vld [vmem:[%s3 + $0x48] sm:$0xff]
  %v327 = vld [vmem:[%s3 + $0x50] sm:$0xff]
  %v328 = vld [vmem:[%s3 + $0x58] sm:$0xff]
  %v329 = vld [vmem:[%s3 + $0x60] sm:$0xff]
  %v330 = vld [vmem:[%s3 + $0x68] sm:$0xff]
  %v331 = vld [vmem:[%s3 + $0x70] sm:$0xff]
  %v332 = vld [vmem:[%s3 + $0x78] sm:$0xff]
  %v333 = vld [vmem:[%s3 + $0x80] sm:$0xff]
  %v334 = vld [vmem:[%s3 + $0x88] sm:$0xff]
  %v335 = vld [vmem:[%s3 + $0x90] sm:$0xff]
  %v336 = vld [vmem:[%s3 + $0x98] sm:$0xff]
  %v337 = vld [vmem:[%s3 + $0xa0] sm:$0xff]
  %v338 = vld [vmem:[%s3 + $0xa8] sm:$0xff]
  %v339 = vld [vmem:[%s3 + $0xb0] sm:$0xff]
  %v340 = vld [vmem:[%s3 + $0xb8] sm:$0xff]
  %v341 = vld [vmem:[%s3 + $0xc0] sm:$0xff]
  %v342 = vld [vmem:[%s3 + $0xc8] sm:$0xff]
  %v343 = vld [vmem:[%s3 + $0xd0] sm:$0xff]
  %v344 = vld [vmem:[%s3 + $0xd8] sm:$0xff]
  %v345 = vld [vmem:[%s3 + $0xe0] sm:$0xff]
  %v346 = vld [vmem:[%s3 + $0xe8] sm:$0xff]
  %v347 = vld [vmem:[%s3 + $0xf0] sm:$0xff]
  %v348 = vld [vmem:[%s3 + $0xf8] sm:$0xff]
  %v349 = vld [vmem:[%s3 + $0x100] sm:$0xff]
  %v350 = vld [vmem:[%s3 + $0x108] sm:$0xff]
  %v351 = vld [vmem:[%s3 + $0x110] sm:$0xff]
  %v352 = vld [vmem:[%s3 + $0x118] sm:$0xff]
  %v353 = vld [vmem:[%s3 + $0x120] sm:$0xff]
  %v354 = vld [vmem:[%s3 + $0x128] sm:$0xff]
  %v355 = vld [vmem:[%s3 + $0x130] sm:$0xff]
  %v356 = vld [vmem:[%s3 + $0x138] sm:$0xff]
  %v357 = vld [vmem:[%s3 + $0x140] sm:$0xff]
  %v358 = vld [vmem:[%s3 + $0x148] sm:$0xff]
  %v359 = vld [vmem:[%s3 + $0x150] sm:$0xff]
  %v360 = vld [vmem:[%s3 + $0x158] sm:$0xff]
  %v361 = vld [vmem:[%s3 + $0x160] sm:$0xff]
  %v362 = vld [vmem:[%s3 + $0x168] sm:$0xff]
  %v363 = vld [vmem:[%s3 + $0x170] sm:$0xff]
  %v364 = vld [vmem:[%s3 + $0x178] sm:$0xff]
  %v365 = vld [vmem:[%s4] sm:$0x1]
  %366 = vmatprep.subr.mxu0 %v363
  %367 = vmatpush1.msra.mxu0 %v362
  %368 = vmatprep.subr.mxu0 %v360
  %369 = vmatpush1.msra.mxu0 %v359
  %370 = vmatprep.subr.mxu0 %v357
  %371 = vmatpush1.msra.mxu0 %v356
  %372 = vmatprep.subr.mxu0 %v354
  %373 = vmatpush1.msra.mxu0 %v353
  %374 = vmatprep.subr.mxu0 %v351
  %375 = vmatpush1.msra.mxu0 %v350
  %376 = vmatprep.subr.mxu0 %v348
  %377 = vmatpush1.msra.mxu0 %v347
  %378 = vmatprep.subr.mxu0 %v345
  %379 = vmatpush1.msra.mxu0 %v344
  %380 = vmatprep.subr.mxu0 %v342
  %381 = vmatpush1.msra.mxu0 %v341
  %382 = vmatprep.subr.mxu0 %v339
  %383 = vmatpush1.msra.mxu0 %v338
  %384 = vmatprep.subr.mxu0 %v336
  %385 = vmatpush1.msra.mxu0 %v335
  %386 = vmatprep.subr.mxu0 %v333
  %387 = vmatpush1.msra.mxu0 %v332
  %388 = vmatprep.subr.mxu0 %v330
  %389 = vmatpush1.msra.mxu0 %v329
  %390 = vmatprep.subr.mxu0 %v327
  %391 = vmatpush1.msra.mxu0 %v326
  %392 = vmatprep.subr.mxu0 %v324
  %393 = vmatpush1.msra.mxu0 %v323
  %394 = vmatprep.subr.mxu0 %v321
  %395 = vmatpush1.msra.mxu0 %v320
  %396 = vmatprep.subr.mxu0 %v318
  %397 = vmatpush1.msra.mxu0 %v317
  %398 = vmatprep.subr.mxu0 0.0
  %399 = vmatpush2.msra.mxu0 0.0
  %400 = vmatprep.subr.mxu0 0.0
  %401 = vmatpush2.msra.mxu0 0.0
  %402 = vmatprep.subr.mxu0 0.0
  %403 = vmatpush2.msra.mxu0 0.0
  %404 = vmatprep.subr.mxu0 0.0
  %405 = vmatpush2.msra.mxu0 0.0
  %406 = vmatprep.subr.mxu0 0.0
  %407 = vmatpush2.msra.mxu0 0.0
  %408 = vmatprep.subr.mxu0 0.0
  %409 = vmatpush2.msra.mxu0 0.0
  %410 = vmatprep.subr.mxu0 0.0
  %411 = vmatpush2.msra.mxu0 0.0
  %412 = vmatprep.subr.mxu0 0.0
  %413 = vmatpush2.msra.mxu0 0.0
  %414 = vmatprep.subr.mxu0 0.0
  %415 = vmatpush2.msra.mxu0 0.0
  %416 = vmatprep.subr.mxu0 0.0
  %417 = vmatpush2.msra.mxu0 0.0
  %418 = vmatprep.subr.mxu0 0.0
  %419 = vmatpush2.msra.mxu0 0.0
  %420 = vmatprep.subr.mxu0 0.0
  %421 = vmatpush2.msra.mxu0 0.0
  %422 = vmatprep.subr.mxu0 0.0
  %423 = vmatpush2.msra.mxu0 0.0
  %424 = vmatprep.subr.mxu0 0.0
  %425 = vmatpush2.msra.mxu0 0.0
  %426 = vmatprep.subr.mxu0 0.0
  %427 = vmatpush2.msra.mxu0 0.0
  %428 = vmatprep.subr.mxu0 0.0
  %429 = vmatpush2.msra.mxu0 0.0
  %430 = vmatprep.mubr.f32.mxu0 0.0
  %431 = vmatmul.mubr.f32.gmra.mxu0 0.0
  %v432 = vpop.f32.mrf.mxu0
  %v433 = vadd.f32 0.0, %v432
  %v434 = vpop.f32.mrf.mxu0
  %v435 = vadd.f32 0.0, %v434
  %436 = vdwg.mxu0
  %437 = vmatprep.subr.mxu0 0.0
  %438 = vmatpush1.msra.mxu0 %v364
  %439 = vmatprep.subr.mxu0 0.0
  %440 = vmatpush1.msra.mxu0 %v361
  %441 = vmatprep.subr.mxu0 0.0
  %442 = vmatpush1.msra.mxu0 %v358
  %443 = vmatprep.subr.mxu0 0.0
  %444 = vmatpush1.msra.mxu0 %v355
  %445 = vmatprep.subr.mxu0 0.0
  %446 = vmatpush1.msra.mxu0 %v352
  %447 = vmatprep.subr.mxu0 0.0
  %448 = vmatpush1.msra.mxu0 %v349
  %449 = vmatprep.subr.mxu0 0.0
  %450 = vmatpush1.msra.mxu0 %v346
  %451 = vmatprep.subr.mxu0 0.0
  %452 = vmatpush1.msra.mxu0 %v343
  %453 = vmatprep.subr.mxu0 0.0
  %454 = vmatpush1.msra.mxu0 %v340
  %455 = vmatprep.subr.mxu0 0.0
  %456 = vmatpush1.msra.mxu0 %v337
  %457 = vmatprep.subr.mxu0 0.0
  %458 = vmatpush1.msra.mxu0 %v334
  %459 = vmatprep.subr.mxu0 0.0
  %460 = vmatpush1.msra.mxu0 %v331
  %461 = vmatprep.subr.mxu0 0.0
  %462 = vmatpush1.msra.mxu0 %v328
  %463 = vmatprep.subr.mxu0 0.0
  %464 = vmatpush1.msra.mxu0 %v325
  %465 = vmatprep.subr.mxu0 0.0
  %466 = vmatpush1.msra.mxu0 %v322
  %467 = vmatprep.subr.mxu0 0.0
  %468 = vmatpush1.msra.mxu0 %v319
  %469 = vmatprep.subr.mxu0 0.0
  %470 = vmatpush2.msra.mxu0 0.0
  %471 = vmatprep.subr.mxu0 0.0
  %472 = vmatpush2.msra.mxu0 0.0
  %473 = vmatprep.subr.mxu0 0.0
  %474 = vmatpush2.msra.mxu0 0.0
  %475 = vmatprep.subr.mxu0 0.0
  %476 = vmatpush2.msra.mxu0 0.0
  %477 = vmatprep.subr.mxu0 0.0
  %478 = vmatpush2.msra.mxu0 0.0
  %479 = vmatprep.subr.mxu0 0.0
  %480 = vmatpush2.msra.mxu0 0.0
  %481 = vmatprep.subr.mxu0 0.0
  %482 = vmatpush2.msra.mxu0 0.0
  %483 = vmatprep.subr.mxu0 0.0
  %484 = vmatpush2.msra.mxu0 0.0
  %485 = vmatprep.subr.mxu0 0.0
  %486 = vmatpush2.msra.mxu0 0.0
  %487 = vmatprep.subr.mxu0 0.0
  %488 = vmatpush2.msra.mxu0 0.0
  %489 = vmatprep.subr.mxu0 0.0
  %490 = vmatpush2.msra.mxu0 0.0
  %491 = vmatprep.subr.mxu0 0.0
  %492 = vmatpush2.msra.mxu0 0.0
  %493 = vmatprep.subr.mxu0 0.0
  %494 = vmatpush2.msra.mxu0 0.0
  %495 = vmatprep.subr.mxu0 0.0
  %496 = vmatpush2.msra.mxu0 0.0
  %497 = vmatprep.subr.mxu0 0.0
  %498 = vmatpush2.msra.mxu0 0.0
  %499 = vmatprep.subr.mxu0 0.0
  %500 = vmatpush2.msra.mxu0 0.0
  %501 = vmatprep.mubr.f32.mxu0 0.0
  %502 = vmatmul.mubr.f32.gmra.mxu0 0.0
  %v503 = vpop.f32.mrf.mxu0
  %v504 = vadd.f32 0.0, %v503
  %v505 = vpop.f32.mrf.mxu0
  %506 = vdwg.mxu0
  %v507 = vadd.f32 %v166, %v433
  %v508 = vxor.u32 %v507, 2147483648
  %v509 = vmul.f32 %v508, 1.442695
  %v510 = vpow.pop %v509
  %v511 = vadd.f32 %v510, 1.0
  %v512 = vrcp.pop %v511
  %v513 = vmul.f32 1.0, %v512
  %v514 = vadd.f32 %v168, %v435
  %v515 = vxor.u32 %v514, 2147483648
  %v516 = vmul.f32 %v515, 1.442695
  %v517 = vpow.pop %v516
  %v518 = vadd.f32 %v517, 1.0
  %v519 = vrcp.pop %v518
  %v520 = vmul.f32 1.0, %v519
  %v522 = vlaneseq
  %v523 = vshrl.u32 %v522, 7
  %v524 = vsub.s32 0, %v523
  %v525 = vrot.slane %v365, %v524
  %v527 = vadd.f32 %v504, %v525
  %v528 = vmul.f32 %v513, %v527
  %v529 = vadd.f32 %v279, %v528
  %v530 = vtanh.pop %v529
  %v531 = vsub.f32 1.0, %v520
  %v532 = vmul.f32 %v531, %v530
  %v533 = vmul.f32 %v520, 0.0
  %v534 = vadd.f32 %v532, %v533
  %535 = vmatprep.subr.mxu0 %v363
  %536 = vmatpush1.msra.mxu0 %v362
  %537 = vmatprep.subr.mxu0 %v360
  %538 = vmatpush1.msra.mxu0 %v359
  %539 = vmatprep.subr.mxu0 %v357
  %540 = vmatpush1.msra.mxu0 %v356
  %541 = vmatprep.subr.mxu0 %v354
  %542 = vmatpush1.msra.mxu0 %v353
  %543 = vmatprep.subr.mxu0 %v351
  %544 = vmatpush1.msra.mxu0 %v350
  %545 = vmatprep.subr.mxu0 %v348
  %546 = vmatpush1.msra.mxu0 %v347
  %547 = vmatprep.subr.mxu0 %v345
  %548 = vmatpush1.msra.mxu0 %v344
  %549 = vmatprep.subr.mxu0 %v342
  %550 = vmatpush1.msra.mxu0 %v341
  %551 = vmatprep.subr.mxu0 %v339
  %552 = vmatpush1.msra.mxu0 %v338
  %553 = vmatprep.subr.mxu0 %v336
  %554 = vmatpush1.msra.mxu0 %v335
  %555 = vmatprep.subr.mxu0 %v333
  %556 = vmatpush1.msra.mxu0 %v332
  %557 = vmatprep.subr.mxu0 %v330
  %558 = vmatpush1.msra.mxu0 %v329
  %559 = vmatprep.subr.mxu0 %v327
  %560 = vmatpush1.msra.mxu0 %v326
  %561 = vmatprep.subr.mxu0 %v324
  %562 = vmatpush1.msra.mxu0 %v323
  %563 = vmatprep.subr.mxu0 %v321
  %564 = vmatpush1.msra.mxu0 %v320
  %565 = vmatprep.subr.mxu0 %v318
  %566 = vmatpush1.msra.mxu0 %v317
  %567 = vmatprep.subr.mxu0 0.0
  %568 = vmatpush2.msra.mxu0 0.0
  %569 = vmatprep.subr.mxu0 0.0
  %570 = vmatpush2.msra.mxu0 0.0
  %571 = vmatprep.subr.mxu0 0.0
  %572 = vmatpush2.msra.mxu0 0.0
  %573 = vmatprep.subr.mxu0 0.0
  %574 = vmatpush2.msra.mxu0 0.0
  %575 = vmatprep.subr.mxu0 0.0
  %576 = vmatpush2.msra.mxu0 0.0
  %577 = vmatprep.subr.mxu0 0.0
  %578 = vmatpush2.msra.mxu0 0.0
  %579 = vmatprep.subr.mxu0 0.0
  %580 = vmatpush2.msra.mxu0 0.0
  %581 = vmatprep.subr.mxu0 0.0
  %582 = vmatpush2.msra.mxu0 0.0
  %583 = vmatprep.subr.mxu0 0.0
  %584 = vmatpush2.msra.mxu0 0.0
  %585 = vmatprep.subr.mxu0 0.0
  %586 = vmatpush2.msra.mxu0 0.0
  %587 = vmatprep.subr.mxu0 0.0
  %588 = vmatpush2.msra.mxu0 0.0
  %589 = vmatprep.subr.mxu0 0.0
  %590 = vmatpush2.msra.mxu0 0.0
  %591 = vmatprep.subr.mxu0 0.0
  %592 = vmatpush2.msra.mxu0 0.0
  %593 = vmatprep.subr.mxu0 0.0
  %594 = vmatpush2.msra.mxu0 0.0
  %595 = vmatprep.subr.mxu0 0.0
  %596 = vmatpush2.msra.mxu0 0.0
  %597 = vmatprep.subr.mxu0 0.0
  %598 = vmatpush2.msra.mxu0 0.0
  %599 = vmatprep.mubr.f32.mxu0 0.0
  %600 = vmatmul.mubr.f32.gmra.mxu0 %v534
  %v601 = vpop.f32.mrf.mxu0
  %v602 = vadd.f32 0.0, %v601
  %v603 = vpop.f32.mrf.mxu0
  %v604 = vadd.f32 0.0, %v603
  %605 = vdwg.mxu0
  %606 = vmatprep.subr.mxu0 0.0
  %607 = vmatpush1.msra.mxu0 %v364
  %608 = vmatprep.subr.mxu0 0.0
  %609 = vmatpush1.msra.mxu0 %v361
  %610 = vmatprep.subr.mxu0 0.0
  %611 = vmatpush1.msra.mxu0 %v358
  %612 = vmatprep.subr.mxu0 0.0
  %613 = vmatpush1.msra.mxu0 %v355
  %614 = vmatprep.subr.mxu0 0.0
  %615 = vmatpush1.msra.mxu0 %v352
  %616 = vmatprep.subr.mxu0 0.0
  %617 = vmatpush1.msra.mxu0 %v349
  %618 = vmatprep.subr.mxu0 0.0
  %619 = vmatpush1.msra.mxu0 %v346
  %620 = vmatprep.subr.mxu0 0.0
  %621 = vmatpush1.msra.mxu0 %v343
  %622 = vmatprep.subr.mxu0 0.0
  %623 = vmatpush1.msra.mxu0 %v340
  %624 = vmatprep.subr.mxu0 0.0
  %625 = vmatpush1.msra.mxu0 %v337
  %626 = vmatprep.subr.mxu0 0.0
  %627 = vmatpush1.msra.mxu0 %v334
  %628 = vmatprep.subr.mxu0 0.0
  %629 = vmatpush1.msra.mxu0 %v331
  %630 = vmatprep.subr.mxu0 0.0
  %631 = vmatpush1.msra.mxu0 %v328
  %632 = vmatprep.subr.mxu0 0.0
  %633 = vmatpush1.msra.mxu0 %v325
  %634 = vmatprep.subr.mxu0 0.0
  %635 = vmatpush1.msra.mxu0 %v322
  %636 = vmatprep.subr.mxu0 0.0
  %637 = vmatpush1.msra.mxu0 %v319
  %638 = vmatprep.subr.mxu0 0.0
  %639 = vmatpush2.msra.mxu0 0.0
  %640 = vmatprep.subr.mxu0 0.0
  %641 = vmatpush2.msra.mxu0 0.0
  %642 = vmatprep.subr.mxu0 0.0
  %643 = vmatpush2.msra.mxu0 0.0
  %644 = vmatprep.subr.mxu0 0.0
  %645 = vmatpush2.msra.mxu0 0.0
  %646 = vmatprep.subr.mxu0 0.0
  %647 = vmatpush2.msra.mxu0 0.0
  %648 = vmatprep.subr.mxu0 0.0
  %649 = vmatpush2.msra.mxu0 0.0
  %650 = vmatprep.subr.mxu0 0.0
  %651 = vmatpush2.msra.mxu0 0.0
  %652 = vmatprep.subr.mxu0 0.0
  %653 = vmatpush2.msra.mxu0 0.0
  %654 = vmatprep.subr.mxu0 0.0
  %655 = vmatpush2.msra.mxu0 0.0
  %656 = vmatprep.subr.mxu0 0.0
  %657 = vmatpush2.msra.mxu0 0.0
  %658 = vmatprep.subr.mxu0 0.0
  %659 = vmatpush2.msra.mxu0 0.0
  %660 = vmatprep.subr.mxu0 0.0
  %661 = vmatpush2.msra.mxu0 0.0
  %662 = vmatprep.subr.mxu0 0.0
  %663 = vmatpush2.msra.mxu0 0.0
  %664 = vmatprep.subr.mxu0 0.0
  %665 = vmatpush2.msra.mxu0 0.0
  %666 = vmatprep.subr.mxu0 0.0
  %667 = vmatpush2.msra.mxu0 0.0
  %668 = vmatprep.subr.mxu0 0.0
  %669 = vmatpush2.msra.mxu0 0.0
  %670 = vmatprep.mubr.f32.mxu0 0.0
  %671 = vmatmul.mubr.f32.gmra.mxu0 %v534
  %v672 = vpop.f32.mrf.mxu0
  %v673 = vadd.f32 0.0, %v672
  %v674 = vpop.f32.mrf.mxu0
  %675 = vdwg.mxu0
  %v676 = vadd.f32 %v172, %v602
  %v677 = vxor.u32 %v676, 2147483648
  %v678 = vmul.f32 %v677, 1.442695
  %v679 = vpow.pop %v678
  %v680 = vadd.f32 %v679, 1.0
  %v681 = vrcp.pop %v680
  %v682 = vmul.f32 1.0, %v681
  %v683 = vadd.f32 %v174, %v604
  %v684 = vxor.u32 %v683, 2147483648
  %v685 = vmul.f32 %v684, 1.442695
  %v686 = vpow.pop %v685
  %v687 = vadd.f32 %v686, 1.0
  %v688 = vrcp.pop %v687
  %v689 = vmul.f32 1.0, %v688
  %v690 = vadd.f32 %v673, %v525
  %v691 = vmul.f32 %v682, %v690
  %v692 = vadd.f32 %v284, %v691
  %v693 = vtanh.pop %v692
  %v694 = vsub.f32 1.0, %v689
  %v695 = vmul.f32 %v694, %v693
  %v696 = vmul.f32 %v689, %v534
  %v697 = vadd.f32 %v695, %v696
  %698 = vmatprep.subr.mxu0 %v363
  %699 = vmatpush1.msra.mxu0 %v362
  %700 = vmatprep.subr.mxu0 %v360
  %701 = vmatpush1.msra.mxu0 %v359
  %702 = vmatprep.subr.mxu0 %v357
  %703 = vmatpush1.msra.mxu0 %v356
  %704 = vmatprep.subr.mxu0 %v354
  %705 = vmatpush1.msra.mxu0 %v353
  %706 = vmatprep.subr.mxu0 %v351
  %707 = vmatpush1.msra.mxu0 %v350
  %708 = vmatprep.subr.mxu0 %v348
  %709 = vmatpush1.msra.mxu0 %v347
  %710 = vmatprep.subr.mxu0 %v345
  %711 = vmatpush1.msra.mxu0 %v344
  %712 = vmatprep.subr.mxu0 %v342
  %713 = vmatpush1.msra.mxu0 %v341
  %714 = vmatprep.subr.mxu0 %v339
  %715 = vmatpush1.msra.mxu0 %v338
  %716 = vmatprep.subr.mxu0 %v336
  %717 = vmatpush1.msra.mxu0 %v335
  %718 = vmatprep.subr.mxu0 %v333
  %719 = vmatpush1.msra.mxu0 %v332
  %720 = vmatprep.subr.mxu0 %v330
  %721 = vmatpush1.msra.mxu0 %v329
  %722 = vmatprep.subr.mxu0 %v327
  %723 = vmatpush1.msra.mxu0 %v326
  %724 = vmatprep.subr.mxu0 %v324
  %725 = vmatpush1.msra.mxu0 %v323
  %726 = vmatprep.subr.mxu0 %v321
  %727 = vmatpush1.msra.mxu0 %v320
  %728 = vmatprep.subr.mxu0 %v318
  %729 = vmatpush1.msra.mxu0 %v317
  %730 = vmatprep.subr.mxu0 0.0
  %731 = vmatpush2.msra.mxu0 0.0
  %732 = vmatprep.subr.mxu0 0.0
  %733 = vmatpush2.msra.mxu0 0.0
  %734 = vmatprep.subr.mxu0 0.0
  %735 = vmatpush2.msra.mxu0 0.0
  %736 = vmatprep.subr.mxu0 0.0
  %737 = vmatpush2.msra.mxu0 0.0
  %738 = vmatprep.subr.mxu0 0.0
  %739 = vmatpush2.msra.mxu0 0.0
  %740 = vmatprep.subr.mxu0 0.0
  %741 = vmatpush2.msra.mxu0 0.0
  %742 = vmatprep.subr.mxu0 0.0
  %743 = vmatpush2.msra.mxu0 0.0
  %744 = vmatprep.subr.mxu0 0.0
  %745 = vmatpush2.msra.mxu0 0.0
  %746 = vmatprep.subr.mxu0 0.0
  %747 = vmatpush2.msra.mxu0 0.0
  %748 = vmatprep.subr.mxu0 0.0
  %749 = vmatpush2.msra.mxu0 0.0
  %750 = vmatprep.subr.mxu0 0.0
  %751 = vmatpush2.msra.mxu0 0.0
  %752 = vmatprep.subr.mxu0 0.0
  %753 = vmatpush2.msra.mxu0 0.0
  %754 = vmatprep.subr.mxu0 0.0
  %755 = vmatpush2.msra.mxu0 0.0
  %756 = vmatprep.subr.mxu0 0.0
  %757 = vmatpush2.msra.mxu0 0.0
  %758 = vmatprep.subr.mxu0 0.0
  %759 = vmatpush2.msra.mxu0 0.0
  %760 = vmatprep.subr.mxu0 0.0
  %761 = vmatpush2.msra.mxu0 0.0
  %762 = vmatprep.mubr.f32.mxu0 0.0
  %763 = vmatmul.mubr.f32.gmra.mxu0 %v697
  %v764 = vpop.f32.mrf.mxu0
  %v765 = vadd.f32 0.0, %v764
  %v766 = vpop.f32.mrf.mxu0
  %v767 = vadd.f32 0.0, %v766
  %768 = vdwg.mxu0
  %769 = vmatprep.subr.mxu0 0.0
  %770 = vmatpush1.msra.mxu0 %v364
  %771 = vmatprep.subr.mxu0 0.0
  %772 = vmatpush1.msra.mxu0 %v361
  %773 = vmatprep.subr.mxu0 0.0
  %774 = vmatpush1.msra.mxu0 %v358
  %775 = vmatprep.subr.mxu0 0.0
  %776 = vmatpush1.msra.mxu0 %v355
  %777 = vmatprep.subr.mxu0 0.0
  %778 = vmatpush1.msra.mxu0 %v352
  %779 = vmatprep.subr.mxu0 0.0
  %780 = vmatpush1.msra.mxu0 %v349
  %781 = vmatprep.subr.mxu0 0.0
  %782 = vmatpush1.msra.mxu0 %v346
  %783 = vmatprep.subr.mxu0 0.0
  %784 = vmatpush1.msra.mxu0 %v343
  %785 = vmatprep.subr.mxu0 0.0
  %786 = vmatpush1.msra.mxu0 %v340
  %787 = vmatprep.subr.mxu0 0.0
  %788 = vmatpush1.msra.mxu0 %v337
  %789 = vmatprep.subr.mxu0 0.0
  %790 = vmatpush1.msra.mxu0 %v334
  %791 = vmatprep.subr.mxu0 0.0
  %792 = vmatpush1.msra.mxu0 %v331
  %793 = vmatprep.subr.mxu0 0.0
  %794 = vmatpush1.msra.mxu0 %v328
  %795 = vmatprep.subr.mxu0 0.0
  %796 = vmatpush1.msra.mxu0 %v325
  %797 = vmatprep.subr.mxu0 0.0
  %798 = vmatpush1.msra.mxu0 %v322
  %799 = vmatprep.subr.mxu0 0.0
  %800 = vmatpush1.msra.mxu0 %v319
  %801 = vmatprep.subr.mxu0 0.0
  %802 = vmatpush2.msra.mxu0 0.0
  %803 = vmatprep.subr.mxu0 0.0
  %804 = vmatpush2.msra.mxu0 0.0
  %805 = vmatprep.subr.mxu0 0.0
  %806 = vmatpush2.msra.mxu0 0.0
  %807 = vmatprep.subr.mxu0 0.0
  %808 = vmatpush2.msra.mxu0 0.0
  %809 = vmatprep.subr.mxu0 0.0
  %810 = vmatpush2.msra.mxu0 0.0
  %811 = vmatprep.subr.mxu0 0.0
  %812 = vmatpush2.msra.mxu0 0.0
  %813 = vmatprep.subr.mxu0 0.0
  %814 = vmatpush2.msra.mxu0 0.0
  %815 = vmatprep.subr.mxu0 0.0
  %816 = vmatpush2.msra.mxu0 0.0
  %817 = vmatprep.subr.mxu0 0.0
  %818 = vmatpush2.msra.mxu0 0.0
  %819 = vmatprep.subr.mxu0 0.0
  %820 = vmatpush2.msra.mxu0 0.0
  %821 = vmatprep.subr.mxu0 0.0
  %822 = vmatpush2.msra.mxu0 0.0
  %823 = vmatprep.subr.mxu0 0.0
  %824 = vmatpush2.msra.mxu0 0.0
  %825 = vmatprep.subr.mxu0 0.0
  %826 = vmatpush2.msra.mxu0 0.0
  %827 = vmatprep.subr.mxu0 0.0
  %828 = vmatpush2.msra.mxu0 0.0
  %829 = vmatprep.subr.mxu0 0.0
  %830 = vmatpush2.msra.mxu0 0.0
  %831 = vmatprep.subr.mxu0 0.0
  %832 = vmatpush2.msra.mxu0 0.0
  %833 = vmatprep.mubr.f32.mxu0 0.0
  %834 = vmatmul.mubr.f32.gmra.mxu0 %v697
  %v835 = vpop.f32.mrf.mxu0
  %v836 = vadd.f32 0.0, %v835
  %v837 = vpop.f32.mrf.mxu0
  %838 = vdwg.mxu0
  %v839 = vadd.f32 %v178, %v765
  %v840 = vxor.u32 %v839, 2147483648
  %v841 = vmul.f32 %v840, 1.442695
  %v842 = vpow.pop %v841
  %v843 = vadd.f32 %v842, 1.0
  %v844 = vrcp.pop %v843
  %v845 = vmul.f32 1.0, %v844
  %v846 = vadd.f32 %v180, %v767
  %v847 = vxor.u32 %v846, 2147483648
  %v848 = vmul.f32 %v847, 1.442695
  %v849 = vpow.pop %v848
  %v850 = vadd.f32 %v849, 1.0
  %v851 = vrcp.pop %v850
  %v852 = vmul.f32 1.0, %v851
  %v853 = vadd.f32 %v836, %v525
  %v854 = vmul.f32 %v845, %v853
  %v855 = vadd.f32 %v289, %v854
  %v856 = vtanh.pop %v855
  %v857 = vsub.f32 1.0, %v852
  %v858 = vmul.f32 %v857, %v856
  %v859 = vmul.f32 %v852, %v697
  %v860 = vadd.f32 %v858, %v859
  %861 = vmatprep.subr.mxu0 %v363
  %862 = vmatpush1.msra.mxu0 %v362
  %863 = vmatprep.subr.mxu0 %v360
  %864 = vmatpush1.msra.mxu0 %v359
  %865 = vmatprep.subr.mxu0 %v357
  %866 = vmatpush1.msra.mxu0 %v356
  %867 = vmatprep.subr.mxu0 %v354
  %868 = vmatpush1.msra.mxu0 %v353
  %869 = vmatprep.subr.mxu0 %v351
  %870 = vmatpush1.msra.mxu0 %v350
  %871 = vmatprep.subr.mxu0 %v348
  %872 = vmatpush1.msra.mxu0 %v347
  %873 = vmatprep.subr.mxu0 %v345
  %874 = vmatpush1.msra.mxu0 %v344
  %875 = vmatprep.subr.mxu0 %v342
  %876 = vmatpush1.msra.mxu0 %v341
  %877 = vmatprep.subr.mxu0 %v339
  %878 = vmatpush1.msra.mxu0 %v338
  %879 = vmatprep.subr.mxu0 %v336
  %880 = vmatpush1.msra.mxu0 %v335
  %881 = vmatprep.subr.mxu0 %v333
  %882 = vmatpush1.msra.mxu0 %v332
  %883 = vmatprep.subr.mxu0 %v330
  %884 = vmatpush1.msra.mxu0 %v329
  %885 = vmatprep.subr.mxu0 %v327
  %886 = vmatpush1.msra.mxu0 %v326
  %887 = vmatprep.subr.mxu0 %v324
  %888 = vmatpush1.msra.mxu0 %v323
  %889 = vmatprep.subr.mxu0 %v321
  %890 = vmatpush1.msra.mxu0 %v320
  %891 = vmatprep.subr.mxu0 %v318
  %892 = vmatpush1.msra.mxu0 %v317
  %893 = vmatprep.subr.mxu0 0.0
  %894 = vmatpush2.msra.mxu0 0.0
  %895 = vmatprep.subr.mxu0 0.0
  %896 = vmatpush2.msra.mxu0 0.0
  %897 = vmatprep.subr.mxu0 0.0
  %898 = vmatpush2.msra.mxu0 0.0
  %899 = vmatprep.subr.mxu0 0.0
  %900 = vmatpush2.msra.mxu0 0.0
  %901 = vmatprep.subr.mxu0 0.0
  %902 = vmatpush2.msra.mxu0 0.0
  %903 = vmatprep.subr.mxu0 0.0
  %904 = vmatpush2.msra.mxu0 0.0
  %905 = vmatprep.subr.mxu0 0.0
  %906 = vmatpush2.msra.mxu0 0.0
  %907 = vmatprep.subr.mxu0 0.0
  %908 = vmatpush2.msra.mxu0 0.0
  %909 = vmatprep.subr.mxu0 0.0
  %910 = vmatpush2.msra.mxu0 0.0
  %911 = vmatprep.subr.mxu0 0.0
  %912 = vmatpush2.msra.mxu0 0.0
  %913 = vmatprep.subr.mxu0 0.0
  %914 = vmatpush2.msra.mxu0 0.0
  %915 = vmatprep.subr.mxu0 0.0
  %916 = vmatpush2.msra.mxu0 0.0
  %917 = vmatprep.subr.mxu0 0.0
  %918 = vmatpush2.msra.mxu0 0.0
  %919 = vmatprep.subr.mxu0 0.0
  %920 = vmatpush2.msra.mxu0 0.0
  %921 = vmatprep.subr.mxu0 0.0
  %922 = vmatpush2.msra.mxu0 0.0
  %923 = vmatprep.subr.mxu0 0.0
  %924 = vmatpush2.msra.mxu0 0.0
  %925 = vmatprep.mubr.f32.mxu0 0.0
  %926 = vmatmul.mubr.f32.gmra.mxu0 %v860
  %v927 = vpop.f32.mrf.mxu0
  %v928 = vadd.f32 0.0, %v927
  %v929 = vpop.f32.mrf.mxu0
  %v930 = vadd.f32 0.0, %v929
  %931 = vdwg.mxu0
  %932 = vmatprep.subr.mxu0 0.0
  %933 = vmatpush1.msra.mxu0 %v364
  %934 = vmatprep.subr.mxu0 0.0
  %935 = vmatpush1.msra.mxu0 %v361
  %936 = vmatprep.subr.mxu0 0.0
  %937 = vmatpush1.msra.mxu0 %v358
  %938 = vmatprep.subr.mxu0 0.0
  %939 = vmatpush1.msra.mxu0 %v355
  %940 = vmatprep.subr.mxu0 0.0
  %941 = vmatpush1.msra.mxu0 %v352
  %942 = vmatprep.subr.mxu0 0.0
  %943 = vmatpush1.msra.mxu0 %v349
  %944 = vmatprep.subr.mxu0 0.0
  %945 = vmatpush1.msra.mxu0 %v346
  %946 = vmatprep.subr.mxu0 0.0
  %947 = vmatpush1.msra.mxu0 %v343
  %948 = vmatprep.subr.mxu0 0.0
  %949 = vmatpush1.msra.mxu0 %v340
  %950 = vmatprep.subr.mxu0 0.0
  %951 = vmatpush1.msra.mxu0 %v337
  %952 = vmatprep.subr.mxu0 0.0
  %953 = vmatpush1.msra.mxu0 %v334
  %954 = vmatprep.subr.mxu0 0.0
  %955 = vmatpush1.msra.mxu0 %v331
  %956 = vmatprep.subr.mxu0 0.0
  %957 = vmatpush1.msra.mxu0 %v328
  %958 = vmatprep.subr.mxu0 0.0
  %959 = vmatpush1.msra.mxu0 %v325
  %960 = vmatprep.subr.mxu0 0.0
  %961 = vmatpush1.msra.mxu0 %v322
  %962 = vmatprep.subr.mxu0 0.0
  %963 = vmatpush1.msra.mxu0 %v319
  %964 = vmatprep.subr.mxu0 0.0
  %965 = vmatpush2.msra.mxu0 0.0
  %966 = vmatprep.subr.mxu0 0.0
  %967 = vmatpush2.msra.mxu0 0.0
  %968 = vmatprep.subr.mxu0 0.0
  %969 = vmatpush2.msra.mxu0 0.0
  %970 = vmatprep.subr.mxu0 0.0
  %971 = vmatpush2.msra.mxu0 0.0
  %972 = vmatprep.subr.mxu0 0.0
  %973 = vmatpush2.msra.mxu0 0.0
  %974 = vmatprep.subr.mxu0 0.0
  %975 = vmatpush2.msra.mxu0 0.0
  %976 = vmatprep.subr.mxu0 0.0
  %977 = vmatpush2.msra.mxu0 0.0
  %978 = vmatprep.subr.mxu0 0.0
  %979 = vmatpush2.msra.mxu0 0.0
  %980 = vmatprep.subr.mxu0 0.0
  %981 = vmatpush2.msra.mxu0 0.0
  %982 = vmatprep.subr.mxu0 0.0
  %983 = vmatpush2.msra.mxu0 0.0
  %984 = vmatprep.subr.mxu0 0.0
  %985 = vmatpush2.msra.mxu0 0.0
  %986 = vmatprep.subr.mxu0 0.0
  %987 = vmatpush2.msra.mxu0 0.0
  %988 = vmatprep.subr.mxu0 0.0
  %989 = vmatpush2.msra.mxu0 0.0
  %990 = vmatprep.subr.mxu0 0.0
  %991 = vmatpush2.msra.mxu0 0.0
  %992 = vmatprep.subr.mxu0 0.0
  %993 = vmatpush2.msra.mxu0 0.0
  %994 = vmatprep.subr.mxu0 0.0
  %995 = vmatpush2.msra.mxu0 0.0
  %996 = vmatprep.mubr.f32.mxu0 0.0
  %997 = vmatmul.mubr.f32.gmra.mxu0 %v860
  %v998 = vpop.f32.mrf.mxu0
  %v999 = vadd.f32 0.0, %v998
  %v1000 = vpop.f32.mrf.mxu0
  %1001 = vdwg.mxu0
  %v1002 = vadd.f32 %v184, %v928
  %v1003 = vxor.u32 %v1002, 2147483648
  %v1004 = vmul.f32 %v1003, 1.442695
  %v1005 = vpow.pop %v1004
  %v1006 = vadd.f32 %v1005, 1.0
  %v1007 = vrcp.pop %v1006
  %v1008 = vmul.f32 1.0, %v1007
  %v1009 = vadd.f32 %v186, %v930
  %v1010 = vxor.u32 %v1009, 2147483648
  %v1011 = vmul.f32 %v1010, 1.442695
  %v1012 = vpow.pop %v1011
  %v1013 = vadd.f32 %v1012, 1.0
  %v1014 = vrcp.pop %v1013
  %v1015 = vmul.f32 1.0, %v1014
  %v1016 = vadd.f32 %v999, %v525
  %v1017 = vmul.f32 %v1008, %v1016
  %v1018 = vadd.f32 %v294, %v1017
  %v1019 = vtanh.pop %v1018
  %v1020 = vsub.f32 1.0, %v1015
  %v1021 = vmul.f32 %v1020, %v1019
  %v1022 = vmul.f32 %v1015, %v860
  %v1023 = vadd.f32 %v1021, %v1022
  %1024 = vmatprep.subr.mxu0 %v363
  %1025 = vmatpush1.msra.mxu0 %v362
  %1026 = vmatprep.subr.mxu0 %v360
  %1027 = vmatpush1.msra.mxu0 %v359
  %1028 = vmatprep.subr.mxu0 %v357
  %1029 = vmatpush1.msra.mxu0 %v356
  %1030 = vmatprep.subr.mxu0 %v354
  %1031 = vmatpush1.msra.mxu0 %v353
  %1032 = vmatprep.subr.mxu0 %v351
  %1033 = vmatpush1.msra.mxu0 %v350
  %1034 = vmatprep.subr.mxu0 %v348
  %1035 = vmatpush1.msra.mxu0 %v347
  %1036 = vmatprep.subr.mxu0 %v345
  %1037 = vmatpush1.msra.mxu0 %v344
  %1038 = vmatprep.subr.mxu0 %v342
  %1039 = vmatpush1.msra.mxu0 %v341
  %1040 = vmatprep.subr.mxu0 %v339
  %1041 = vmatpush1.msra.mxu0 %v338
  %1042 = vmatprep.subr.mxu0 %v336
  %1043 = vmatpush1.msra.mxu0 %v335
  %1044 = vmatprep.subr.mxu0 %v333
  %1045 = vmatpush1.msra.mxu0 %v332
  %1046 = vmatprep.subr.mxu0 %v330
  %1047 = vmatpush1.msra.mxu0 %v329
  %1048 = vmatprep.subr.mxu0 %v327
  %1049 = vmatpush1.msra.mxu0 %v326
  %1050 = vmatprep.subr.mxu0 %v324
  %1051 = vmatpush1.msra.mxu0 %v323
  %1052 = vmatprep.subr.mxu0 %v321
  %1053 = vmatpush1.msra.mxu0 %v320
  %1054 = vmatprep.subr.mxu0 %v318
  %1055 = vmatpush1.msra.mxu0 %v317
  %1056 = vmatprep.subr.mxu0 0.0
  %1057 = vmatpush2.msra.mxu0 0.0
  %1058 = vmatprep.subr.mxu0 0.0
  %1059 = vmatpush2.msra.mxu0 0.0
  %1060 = vmatprep.subr.mxu0 0.0
  %1061 = vmatpush2.msra.mxu0 0.0
  %1062 = vmatprep.subr.mxu0 0.0
  %1063 = vmatpush2.msra.mxu0 0.0
  %1064 = vmatprep.subr.mxu0 0.0
  %1065 = vmatpush2.msra.mxu0 0.0
  %1066 = vmatprep.subr.mxu0 0.0
  %1067 = vmatpush2.msra.mxu0 0.0
  %1068 = vmatprep.subr.mxu0 0.0
  %1069 = vmatpush2.msra.mxu0 0.0
  %1070 = vmatprep.subr.mxu0 0.0
  %1071 = vmatpush2.msra.mxu0 0.0
  %1072 = vmatprep.subr.mxu0 0.0
  %1073 = vmatpush2.msra.mxu0 0.0
  %1074 = vmatprep.subr.mxu0 0.0
  %1075 = vmatpush2.msra.mxu0 0.0
  %1076 = vmatprep.subr.mxu0 0.0
  %1077 = vmatpush2.msra.mxu0 0.0
  %1078 = vmatprep.subr.mxu0 0.0
  %1079 = vmatpush2.msra.mxu0 0.0
  %1080 = vmatprep.subr.mxu0 0.0
  %1081 = vmatpush2.msra.mxu0 0.0
  %1082 = vmatprep.subr.mxu0 0.0
  %1083 = vmatpush2.msra.mxu0 0.0
  %1084 = vmatprep.subr.mxu0 0.0
  %1085 = vmatpush2.msra.mxu0 0.0
  %1086 = vmatprep.subr.mxu0 0.0
  %1087 = vmatpush2.msra.mxu0 0.0
  %1088 = vmatprep.mubr.f32.mxu0 0.0
  %1089 = vmatmul.mubr.f32.gmra.mxu0 %v1023
  %v1090 = vpop.f32.mrf.mxu0
  %v1091 = vadd.f32 0.0, %v1090
  %v1092 = vpop.f32.mrf.mxu0
  %v1093 = vadd.f32 0.0, %v1092
  %1094 = vdwg.mxu0
  %1095 = vmatprep.subr.mxu0 0.0
  %1096 = vmatpush1.msra.mxu0 %v364
  %1097 = vmatprep.subr.mxu0 0.0
  %1098 = vmatpush1.msra.mxu0 %v361
  %1099 = vmatprep.subr.mxu0 0.0
  %1100 = vmatpush1.msra.mxu0 %v358
  %1101 = vmatprep.subr.mxu0 0.0
  %1102 = vmatpush1.msra.mxu0 %v355
  %1103 = vmatprep.subr.mxu0 0.0
  %1104 = vmatpush1.msra.mxu0 %v352
  %1105 = vmatprep.subr.mxu0 0.0
  %1106 = vmatpush1.msra.mxu0 %v349
  %1107 = vmatprep.subr.mxu0 0.0
  %1108 = vmatpush1.msra.mxu0 %v346
  %1109 = vmatprep.subr.mxu0 0.0
  %1110 = vmatpush1.msra.mxu0 %v343
  %1111 = vmatprep.subr.mxu0 0.0
  %1112 = vmatpush1.msra.mxu0 %v340
  %1113 = vmatprep.subr.mxu0 0.0
  %1114 = vmatpush1.msra.mxu0 %v337
  %1115 = vmatprep.subr.mxu0 0.0
  %1116 = vmatpush1.msra.mxu0 %v334
  %1117 = vmatprep.subr.mxu0 0.0
  %1118 = vmatpush1.msra.mxu0 %v331
  %1119 = vmatprep.subr.mxu0 0.0
  %1120 = vmatpush1.msra.mxu0 %v328
  %1121 = vmatprep.subr.mxu0 0.0
  %1122 = vmatpush1.msra.mxu0 %v325
  %1123 = vmatprep.subr.mxu0 0.0
  %1124 = vmatpush1.msra.mxu0 %v322
  %1125 = vmatprep.subr.mxu0 0.0
  %1126 = vmatpush1.msra.mxu0 %v319
  %1127 = vmatprep.subr.mxu0 0.0
  %1128 = vmatpush2.msra.mxu0 0.0
  %1129 = vmatprep.subr.mxu0 0.0
  %1130 = vmatpush2.msra.mxu0 0.0
  %1131 = vmatprep.subr.mxu0 0.0
  %1132 = vmatpush2.msra.mxu0 0.0
  %1133 = vmatprep.subr.mxu0 0.0
  %1134 = vmatpush2.msra.mxu0 0.0
  %1135 = vmatprep.subr.mxu0 0.0
  %1136 = vmatpush2.msra.mxu0 0.0
  %1137 = vmatprep.subr.mxu0 0.0
  %1138 = vmatpush2.msra.mxu0 0.0
  %1139 = vmatprep.subr.mxu0 0.0
  %1140 = vmatpush2.msra.mxu0 0.0
  %1141 = vmatprep.subr.mxu0 0.0
  %1142 = vmatpush2.msra.mxu0 0.0
  %1143 = vmatprep.subr.mxu0 0.0
  %1144 = vmatpush2.msra.mxu0 0.0
  %1145 = vmatprep.subr.mxu0 0.0
  %1146 = vmatpush2.msra.mxu0 0.0
  %1147 = vmatprep.subr.mxu0 0.0
  %1148 = vmatpush2.msra.mxu0 0.0
  %1149 = vmatprep.subr.mxu0 0.0
  %1150 = vmatpush2.msra.mxu0 0.0
  %1151 = vmatprep.subr.mxu0 0.0
  %1152 = vmatpush2.msra.mxu0 0.0
  %1153 = vmatprep.subr.mxu0 0.0
  %1154 = vmatpush2.msra.mxu0 0.0
  %1155 = vmatprep.subr.mxu0 0.0
  %1156 = vmatpush2.msra.mxu0 0.0
  %1157 = vmatprep.subr.mxu0 0.0
  %1158 = vmatpush2.msra.mxu0 0.0
  %1159 = vmatprep.mubr.f32.mxu0 0.0
  %1160 = vmatmul.mubr.f32.gmra.mxu0 %v1023
  %v1161 = vpop.f32.mrf.mxu0
  %v1162 = vadd.f32 0.0, %v1161
  %v1163 = vpop.f32.mrf.mxu0
  %1164 = vdwg.mxu0
  %v1165 = vadd.f32 %v190, %v1091
  %v1166 = vxor.u32 %v1165, 2147483648
  %v1167 = vmul.f32 %v1166, 1.442695
  %v1168 = vpow.pop %v1167
  %v1169 = vadd.f32 %v1168, 1.0
  %v1170 = vrcp.pop %v1169
  %v1171 = vmul.f32 1.0, %v1170
  %v1172 = vadd.f32 %v192, %v1093
  %v1173 = vxor.u32 %v1172, 2147483648
  %v1174 = vmul.f32 %v1173, 1.442695
  %v1175 = vpow.pop %v1174
  %v1176 = vadd.f32 %v1175, 1.0
  %v1177 = vrcp.pop %v1176
  %v1178 = vmul.f32 1.0, %v1177
  %v1179 = vadd.f32 %v1162, %v525
  %v1180 = vmul.f32 %v1171, %v1179
  %v1181 = vadd.f32 %v299, %v1180
  %v1182 = vtanh.pop %v1181
  %v1183 = vsub.f32 1.0, %v1178
  %v1184 = vmul.f32 %v1183, %v1182
  %v1185 = vmul.f32 %v1178, %v1023
  %v1186 = vadd.f32 %v1184, %v1185
  %1187 = vmatprep.subr.mxu0 %v363
  %1188 = vmatpush1.msra.mxu0 %v362
  %1189 = vmatprep.subr.mxu0 %v360
  %1190 = vmatpush1.msra.mxu0 %v359
  %1191 = vmatprep.subr.mxu0 %v357
  %1192 = vmatpush1.msra.mxu0 %v356
  %1193 = vmatprep.subr.mxu0 %v354
  %1194 = vmatpush1.msra.mxu0 %v353
  %1195 = vmatprep.subr.mxu0 %v351
  %1196 = vmatpush1.msra.mxu0 %v350
  %1197 = vmatprep.subr.mxu0 %v348
  %1198 = vmatpush1.msra.mxu0 %v347
  %1199 = vmatprep.subr.mxu0 %v345
  %1200 = vmatpush1.msra.mxu0 %v344
  %1201 = vmatprep.subr.mxu0 %v342
  %1202 = vmatpush1.msra.mxu0 %v341
  %1203 = vmatprep.subr.mxu0 %v339
  %1204 = vmatpush1.msra.mxu0 %v338
  %1205 = vmatprep.subr.mxu0 %v336
  %1206 = vmatpush1.msra.mxu0 %v335
  %1207 = vmatprep.subr.mxu0 %v333
  %1208 = vmatpush1.msra.mxu0 %v332
  %1209 = vmatprep.subr.mxu0 %v330
  %1210 = vmatpush1.msra.mxu0 %v329
  %1211 = vmatprep.subr.mxu0 %v327
  %1212 = vmatpush1.msra.mxu0 %v326
  %1213 = vmatprep.subr.mxu0 %v324
  %1214 = vmatpush1.msra.mxu0 %v323
  %1215 = vmatprep.subr.mxu0 %v321
  %1216 = vmatpush1.msra.mxu0 %v320
  %1217 = vmatprep.subr.mxu0 %v318
  %1218 = vmatpush1.msra.mxu0 %v317
  %1219 = vmatprep.subr.mxu0 0.0
  %1220 = vmatpush2.msra.mxu0 0.0
  %1221 = vmatprep.subr.mxu0 0.0
  %1222 = vmatpush2.msra.mxu0 0.0
  %1223 = vmatprep.subr.mxu0 0.0
  %1224 = vmatpush2.msra.mxu0 0.0
  %1225 = vmatprep.subr.mxu0 0.0
  %1226 = vmatpush2.msra.mxu0 0.0
  %1227 = vmatprep.subr.mxu0 0.0
  %1228 = vmatpush2.msra.mxu0 0.0
  %1229 = vmatprep.subr.mxu0 0.0
  %1230 = vmatpush2.msra.mxu0 0.0
  %1231 = vmatprep.subr.mxu0 0.0
  %1232 = vmatpush2.msra.mxu0 0.0
  %1233 = vmatprep.subr.mxu0 0.0
  %1234 = vmatpush2.msra.mxu0 0.0
  %1235 = vmatprep.subr.mxu0 0.0
  %1236 = vmatpush2.msra.mxu0 0.0
  %1237 = vmatprep.subr.mxu0 0.0
  %1238 = vmatpush2.msra.mxu0 0.0
  %1239 = vmatprep.subr.mxu0 0.0
  %1240 = vmatpush2.msra.mxu0 0.0
  %1241 = vmatprep.subr.mxu0 0.0
  %1242 = vmatpush2.msra.mxu0 0.0
  %1243 = vmatprep.subr.mxu0 0.0
  %1244 = vmatpush2.msra.mxu0 0.0
  %1245 = vmatprep.subr.mxu0 0.0
  %1246 = vmatpush2.msra.mxu0 0.0
  %1247 = vmatprep.subr.mxu0 0.0
  %1248 = vmatpush2.msra.mxu0 0.0
  %1249 = vmatprep.subr.mxu0 0.0
  %1250 = vmatpush2.msra.mxu0 0.0
  %1251 = vmatprep.mubr.f32.mxu0 0.0
  %1252 = vmatmul.mubr.f32.gmra.mxu0 %v1186
  %v1253 = vpop.f32.mrf.mxu0
  %v1254 = vadd.f32 0.0, %v1253
  %v1255 = vpop.f32.mrf.mxu0
  %v1256 = vadd.f32 0.0, %v1255
  %1257 = vdwg.mxu0
  %1258 = vmatprep.subr.mxu0 0.0
  %1259 = vmatpush1.msra.mxu0 %v364
  %1260 = vmatprep.subr.mxu0 0.0
  %1261 = vmatpush1.msra.mxu0 %v361
  %1262 = vmatprep.subr.mxu0 0.0
  %1263 = vmatpush1.msra.mxu0 %v358
  %1264 = vmatprep.subr.mxu0 0.0
  %1265 = vmatpush1.msra.mxu0 %v355
  %1266 = vmatprep.subr.mxu0 0.0
  %1267 = vmatpush1.msra.mxu0 %v352
  %1268 = vmatprep.subr.mxu0 0.0
  %1269 = vmatpush1.msra.mxu0 %v349
  %1270 = vmatprep.subr.mxu0 0.0
  %1271 = vmatpush1.msra.mxu0 %v346
  %1272 = vmatprep.subr.mxu0 0.0
  %1273 = vmatpush1.msra.mxu0 %v343
  %1274 = vmatprep.subr.mxu0 0.0
  %1275 = vmatpush1.msra.mxu0 %v340
  %1276 = vmatprep.subr.mxu0 0.0
  %1277 = vmatpush1.msra.mxu0 %v337
  %1278 = vmatprep.subr.mxu0 0.0
  %1279 = vmatpush1.msra.mxu0 %v334
  %1280 = vmatprep.subr.mxu0 0.0
  %1281 = vmatpush1.msra.mxu0 %v331
  %1282 = vmatprep.subr.mxu0 0.0
  %1283 = vmatpush1.msra.mxu0 %v328
  %1284 = vmatprep.subr.mxu0 0.0
  %1285 = vmatpush1.msra.mxu0 %v325
  %1286 = vmatprep.subr.mxu0 0.0
  %1287 = vmatpush1.msra.mxu0 %v322
  %1288 = vmatprep.subr.mxu0 0.0
  %1289 = vmatpush1.msra.mxu0 %v319
  %1290 = vmatprep.subr.mxu0 0.0
  %1291 = vmatpush2.msra.mxu0 0.0
  %1292 = vmatprep.subr.mxu0 0.0
  %1293 = vmatpush2.msra.mxu0 0.0
  %1294 = vmatprep.subr.mxu0 0.0
  %1295 = vmatpush2.msra.mxu0 0.0
  %1296 = vmatprep.subr.mxu0 0.0
  %1297 = vmatpush2.msra.mxu0 0.0
  %1298 = vmatprep.subr.mxu0 0.0
  %1299 = vmatpush2.msra.mxu0 0.0
  %1300 = vmatprep.subr.mxu0 0.0
  %1301 = vmatpush2.msra.mxu0 0.0
  %1302 = vmatprep.subr.mxu0 0.0
  %1303 = vmatpush2.msra.mxu0 0.0
  %1304 = vmatprep.subr.mxu0 0.0
  %1305 = vmatpush2.msra.mxu0 0.0
  %1306 = vmatprep.subr.mxu0 0.0
  %1307 = vmatpush2.msra.mxu0 0.0
  %1308 = vmatprep.subr.mxu0 0.0
  %1309 = vmatpush2.msra.mxu0 0.0
  %1310 = vmatprep.subr.mxu0 0.0
  %1311 = vmatpush2.msra.mxu0 0.0
  %1312 = vmatprep.subr.mxu0 0.0
  %1313 = vmatpush2.msra.mxu0 0.0
  %1314 = vmatprep.subr.mxu0 0.0
  %1315 = vmatpush2.msra.mxu0 0.0
  %1316 = vmatprep.subr.mxu0 0.0
  %1317 = vmatpush2.msra.mxu0 0.0
  %1318 = vmatprep.subr.mxu0 0.0
  %1319 = vmatpush2.msra.mxu0 0.0
  %1320 = vmatprep.subr.mxu0 0.0
  %1321 = vmatpush2.msra.mxu0 0.0
  %1322 = vmatprep.mubr.f32.mxu0 0.0
  %1323 = vmatmul.mubr.f32.gmra.mxu0 %v1186
  %v1324 = vpop.f32.mrf.mxu0
  %v1325 = vadd.f32 0.0, %v1324
  %v1326 = vpop.f32.mrf.mxu0
  %1327 = vdwg.mxu0
  %v1328 = vadd.f32 %v196, %v1254
  %v1329 = vxor.u32 %v1328, 2147483648
  %v1330 = vmul.f32 %v1329, 1.442695
  %v1331 = vpow.pop %v1330
  %v1332 = vadd.f32 %v1331, 1.0
  %v1333 = vrcp.pop %v1332
  %v1334 = vmul.f32 1.0, %v1333
  %v1335 = vadd.f32 %v198, %v1256
  %v1336 = vxor.u32 %v1335, 2147483648
  %v1337 = vmul.f32 %v1336, 1.442695
  %v1338 = vpow.pop %v1337
  %v1339 = vadd.f32 %v1338, 1.0
  %v1340 = vrcp.pop %v1339
  %v1341 = vmul.f32 1.0, %v1340
  %v1342 = vadd.f32 %v1325, %v525
  %v1343 = vmul.f32 %v1334, %v1342
  %v1344 = vadd.f32 %v304, %v1343
  %v1345 = vtanh.pop %v1344
  %v1346 = vsub.f32 1.0, %v1341
  %v1347 = vmul.f32 %v1346, %v1345
  %v1348 = vmul.f32 %v1341, %v1186
  %v1349 = vadd.f32 %v1347, %v1348
  %1350 = vmatprep.subr.mxu0 %v363
  %1351 = vmatpush1.msra.mxu0 %v362
  %1352 = vmatprep.subr.mxu0 %v360
  %1353 = vmatpush1.msra.mxu0 %v359
  %1354 = vmatprep.subr.mxu0 %v357
  %1355 = vmatpush1.msra.mxu0 %v356
  %1356 = vmatprep.subr.mxu0 %v354
  %1357 = vmatpush1.msra.mxu0 %v353
  %1358 = vmatprep.subr.mxu0 %v351
  %1359 = vmatpush1.msra.mxu0 %v350
  %1360 = vmatprep.subr.mxu0 %v348
  %1361 = vmatpush1.msra.mxu0 %v347
  %1362 = vmatprep.subr.mxu0 %v345
  %1363 = vmatpush1.msra.mxu0 %v344
  %1364 = vmatprep.subr.mxu0 %v342
  %1365 = vmatpush1.msra.mxu0 %v341
  %1366 = vmatprep.subr.mxu0 %v339
  %1367 = vmatpush1.msra.mxu0 %v338
  %1368 = vmatprep.subr.mxu0 %v336
  %1369 = vmatpush1.msra.mxu0 %v335
  %1370 = vmatprep.subr.mxu0 %v333
  %1371 = vmatpush1.msra.mxu0 %v332
  %1372 = vmatprep.subr.mxu0 %v330
  %1373 = vmatpush1.msra.mxu0 %v329
  %1374 = vmatprep.subr.mxu0 %v327
  %1375 = vmatpush1.msra.mxu0 %v326
  %1376 = vmatprep.subr.mxu0 %v324
  %1377 = vmatpush1.msra.mxu0 %v323
  %1378 = vmatprep.subr.mxu0 %v321
  %1379 = vmatpush1.msra.mxu0 %v320
  %1380 = vmatprep.subr.mxu0 %v318
  %1381 = vmatpush1.msra.mxu0 %v317
  %1382 = vmatprep.subr.mxu0 0.0
  %1383 = vmatpush2.msra.mxu0 0.0
  %1384 = vmatprep.subr.mxu0 0.0
  %1385 = vmatpush2.msra.mxu0 0.0
  %1386 = vmatprep.subr.mxu0 0.0
  %1387 = vmatpush2.msra.mxu0 0.0
  %1388 = vmatprep.subr.mxu0 0.0
  %1389 = vmatpush2.msra.mxu0 0.0
  %1390 = vmatprep.subr.mxu0 0.0
  %1391 = vmatpush2.msra.mxu0 0.0
  %1392 = vmatprep.subr.mxu0 0.0
  %1393 = vmatpush2.msra.mxu0 0.0
  %1394 = vmatprep.subr.mxu0 0.0
  %1395 = vmatpush2.msra.mxu0 0.0
  %1396 = vmatprep.subr.mxu0 0.0
  %1397 = vmatpush2.msra.mxu0 0.0
  %1398 = vmatprep.subr.mxu0 0.0
  %1399 = vmatpush2.msra.mxu0 0.0
  %1400 = vmatprep.subr.mxu0 0.0
  %1401 = vmatpush2.msra.mxu0 0.0
  %1402 = vmatprep.subr.mxu0 0.0
  %1403 = vmatpush2.msra.mxu0 0.0
  %1404 = vmatprep.subr.mxu0 0.0
  %1405 = vmatpush2.msra.mxu0 0.0
  %1406 = vmatprep.subr.mxu0 0.0
  %1407 = vmatpush2.msra.mxu0 0.0
  %1408 = vmatprep.subr.mxu0 0.0
  %1409 = vmatpush2.msra.mxu0 0.0
  %1410 = vmatprep.subr.mxu0 0.0
  %1411 = vmatpush2.msra.mxu0 0.0
  %1412 = vmatprep.subr.mxu0 0.0
  %1413 = vmatpush2.msra.mxu0 0.0
  %1414 = vmatprep.mubr.f32.mxu0 0.0
  %1415 = vmatmul.mubr.f32.gmra.mxu0 %v1349
  %v1416 = vpop.f32.mrf.mxu0
  %v1417 = vadd.f32 0.0, %v1416
  %v1418 = vpop.f32.mrf.mxu0
  %v1419 = vadd.f32 0.0, %v1418
  %1420 = vdwg.mxu0
  %1421 = vmatprep.subr.mxu0 0.0
  %1422 = vmatpush1.msra.mxu0 %v364
  %1423 = vmatprep.subr.mxu0 0.0
  %1424 = vmatpush1.msra.mxu0 %v361
  %1425 = vmatprep.subr.mxu0 0.0
  %1426 = vmatpush1.msra.mxu0 %v358
  %1427 = vmatprep.subr.mxu0 0.0
  %1428 = vmatpush1.msra.mxu0 %v355
  %1429 = vmatprep.subr.mxu0 0.0
  %1430 = vmatpush1.msra.mxu0 %v352
  %1431 = vmatprep.subr.mxu0 0.0
  %1432 = vmatpush1.msra.mxu0 %v349
  %1433 = vmatprep.subr.mxu0 0.0
  %1434 = vmatpush1.msra.mxu0 %v346
  %1435 = vmatprep.subr.mxu0 0.0
  %1436 = vmatpush1.msra.mxu0 %v343
  %1437 = vmatprep.subr.mxu0 0.0
  %1438 = vmatpush1.msra.mxu0 %v340
  %1439 = vmatprep.subr.mxu0 0.0
  %1440 = vmatpush1.msra.mxu0 %v337
  %1441 = vmatprep.subr.mxu0 0.0
  %1442 = vmatpush1.msra.mxu0 %v334
  %1443 = vmatprep.subr.mxu0 0.0
  %1444 = vmatpush1.msra.mxu0 %v331
  %1445 = vmatprep.subr.mxu0 0.0
  %1446 = vmatpush1.msra.mxu0 %v328
  %1447 = vmatprep.subr.mxu0 0.0
  %1448 = vmatpush1.msra.mxu0 %v325
  %1449 = vmatprep.subr.mxu0 0.0
  %1450 = vmatpush1.msra.mxu0 %v322
  %1451 = vmatprep.subr.mxu0 0.0
  %1452 = vmatpush1.msra.mxu0 %v319
  %1453 = vmatprep.subr.mxu0 0.0
  %1454 = vmatpush2.msra.mxu0 0.0
  %1455 = vmatprep.subr.mxu0 0.0
  %1456 = vmatpush2.msra.mxu0 0.0
  %1457 = vmatprep.subr.mxu0 0.0
  %1458 = vmatpush2.msra.mxu0 0.0
  %1459 = vmatprep.subr.mxu0 0.0
  %1460 = vmatpush2.msra.mxu0 0.0
  %1461 = vmatprep.subr.mxu0 0.0
  %1462 = vmatpush2.msra.mxu0 0.0
  %1463 = vmatprep.subr.mxu0 0.0
  %1464 = vmatpush2.msra.mxu0 0.0
  %1465 = vmatprep.subr.mxu0 0.0
  %1466 = vmatpush2.msra.mxu0 0.0
  %1467 = vmatprep.subr.mxu0 0.0
  %1468 = vmatpush2.msra.mxu0 0.0
  %1469 = vmatprep.subr.mxu0 0.0
  %1470 = vmatpush2.msra.mxu0 0.0
  %1471 = vmatprep.subr.mxu0 0.0
  %1472 = vmatpush2.msra.mxu0 0.0
  %1473 = vmatprep.subr.mxu0 0.0
  %1474 = vmatpush2.msra.mxu0 0.0
  %1475 = vmatprep.subr.mxu0 0.0
  %1476 = vmatpush2.msra.mxu0 0.0
  %1477 = vmatprep.subr.mxu0 0.0
  %1478 = vmatpush2.msra.mxu0 0.0
  %1479 = vmatprep.subr.mxu0 0.0
  %1480 = vmatpush2.msra.mxu0 0.0
  %1481 = vmatprep.subr.mxu0 0.0
  %1482 = vmatpush2.msra.mxu0 0.0
  %1483 = vmatprep.subr.mxu0 0.0
  %1484 = vmatpush2.msra.mxu0 0.0
  %1485 = vmatprep.mubr.f32.mxu0 0.0
  %1486 = vmatmul.mubr.f32.gmra.mxu0 %v1349
  %v1487 = vpop.f32.mrf.mxu0
  %v1488 = vadd.f32 0.0, %v1487
  %v1489 = vpop.f32.mrf.mxu0
  %1490 = vdwg.mxu0
  %v1491 = vadd.f32 %v202, %v1417
  %v1492 = vxor.u32 %v1491, 2147483648
  %v1493 = vmul.f32 %v1492, 1.442695
  %v1494 = vpow.pop %v1493
  %v1495 = vadd.f32 %v1494, 1.0
  %v1496 = vrcp.pop %v1495
  %v1497 = vmul.f32 1.0, %v1496
  %v1498 = vadd.f32 %v204, %v1419
  %v1499 = vxor.u32 %v1498, 2147483648
  %v1500 = vmul.f32 %v1499, 1.442695
  %v1501 = vpow.pop %v1500
  %v1502 = vadd.f32 %v1501, 1.0
  %v1503 = vrcp.pop %v1502
  %v1504 = vmul.f32 1.0, %v1503
  %v1505 = vadd.f32 %v1488, %v525
  %v1506 = vmul.f32 %v1497, %v1505
  %v1507 = vadd.f32 %v309, %v1506
  %v1508 = vtanh.pop %v1507
  %v1509 = vsub.f32 1.0, %v1504
  %v1510 = vmul.f32 %v1509, %v1508
  %v1511 = vmul.f32 %v1504, %v1349
  %v1512 = vadd.f32 %v1510, %v1511
  %1513 = vmatprep.subr.mxu0 %v363
  %1514 = vmatpush1.msra.mxu0 %v362
  %1515 = vmatprep.subr.mxu0 %v360
  %1516 = vmatpush1.msra.mxu0 %v359
  %1517 = vmatprep.subr.mxu0 %v357
  %1518 = vmatpush1.msra.mxu0 %v356
  %1519 = vmatprep.subr.mxu0 %v354
  %1520 = vmatpush1.msra.mxu0 %v353
  %1521 = vmatprep.subr.mxu0 %v351
  %1522 = vmatpush1.msra.mxu0 %v350
  %1523 = vmatprep.subr.mxu0 %v348
  %1524 = vmatpush1.msra.mxu0 %v347
  %1525 = vmatprep.subr.mxu0 %v345
  %1526 = vmatpush1.msra.mxu0 %v344
  %1527 = vmatprep.subr.mxu0 %v342
  %1528 = vmatpush1.msra.mxu0 %v341
  %1529 = vmatprep.subr.mxu0 %v339
  %1530 = vmatpush1.msra.mxu0 %v338
  %1531 = vmatprep.subr.mxu0 %v336
  %1532 = vmatpush1.msra.mxu0 %v335
  %1533 = vmatprep.subr.mxu0 %v333
  %1534 = vmatpush1.msra.mxu0 %v332
  %1535 = vmatprep.subr.mxu0 %v330
  %1536 = vmatpush1.msra.mxu0 %v329
  %1537 = vmatprep.subr.mxu0 %v327
  %1538 = vmatpush1.msra.mxu0 %v326
  %1539 = vmatprep.subr.mxu0 %v324
  %1540 = vmatpush1.msra.mxu0 %v323
  %1541 = vmatprep.subr.mxu0 %v321
  %1542 = vmatpush1.msra.mxu0 %v320
  %1543 = vmatprep.subr.mxu0 %v318
  %1544 = vmatpush1.msra.mxu0 %v317
  %1545 = vmatprep.subr.mxu0 0.0
  %1546 = vmatpush2.msra.mxu0 0.0
  %1547 = vmatprep.subr.mxu0 0.0
  %1548 = vmatpush2.msra.mxu0 0.0
  %1549 = vmatprep.subr.mxu0 0.0
  %1550 = vmatpush2.msra.mxu0 0.0
  %1551 = vmatprep.subr.mxu0 0.0
  %1552 = vmatpush2.msra.mxu0 0.0
  %1553 = vmatprep.subr.mxu0 0.0
  %1554 = vmatpush2.msra.mxu0 0.0
  %1555 = vmatprep.subr.mxu0 0.0
  %1556 = vmatpush2.msra.mxu0 0.0
  %1557 = vmatprep.subr.mxu0 0.0
  %1558 = vmatpush2.msra.mxu0 0.0
  %1559 = vmatprep.subr.mxu0 0.0
  %1560 = vmatpush2.msra.mxu0 0.0
  %1561 = vmatprep.subr.mxu0 0.0
  %1562 = vmatpush2.msra.mxu0 0.0
  %1563 = vmatprep.subr.mxu0 0.0
  %1564 = vmatpush2.msra.mxu0 0.0
  %1565 = vmatprep.subr.mxu0 0.0
  %1566 = vmatpush2.msra.mxu0 0.0
  %1567 = vmatprep.subr.mxu0 0.0
  %1568 = vmatpush2.msra.mxu0 0.0
  %1569 = vmatprep.subr.mxu0 0.0
  %1570 = vmatpush2.msra.mxu0 0.0
  %1571 = vmatprep.subr.mxu0 0.0
  %1572 = vmatpush2.msra.mxu0 0.0
  %1573 = vmatprep.subr.mxu0 0.0
  %1574 = vmatpush2.msra.mxu0 0.0
  %1575 = vmatprep.subr.mxu0 0.0
  %1576 = vmatpush2.msra.mxu0 0.0
  %1577 = vmatprep.mubr.f32.mxu0 0.0
  %1578 = vmatmul.mubr.f32.gmra.mxu0 %v1512
  %v1579 = vpop.f32.mrf.mxu0
  %v1580 = vadd.f32 0.0, %v1579
  %v1581 = vpop.f32.mrf.mxu0
  %v1582 = vadd.f32 0.0, %v1581
  %1583 = vdwg.mxu0
  %1584 = vmatprep.subr.mxu0 0.0
  %1585 = vmatpush1.msra.mxu0 %v364
  %1586 = vmatprep.subr.mxu0 0.0
  %1587 = vmatpush1.msra.mxu0 %v361
  %1588 = vmatprep.subr.mxu0 0.0
  %1589 = vmatpush1.msra.mxu0 %v358
  %1590 = vmatprep.subr.mxu0 0.0
  %1591 = vmatpush1.msra.mxu0 %v355
  %1592 = vmatprep.subr.mxu0 0.0
  %1593 = vmatpush1.msra.mxu0 %v352
  %1594 = vmatprep.subr.mxu0 0.0
  %1595 = vmatpush1.msra.mxu0 %v349
  %1596 = vmatprep.subr.mxu0 0.0
  %1597 = vmatpush1.msra.mxu0 %v346
  %1598 = vmatprep.subr.mxu0 0.0
  %1599 = vmatpush1.msra.mxu0 %v343
  %1600 = vmatprep.subr.mxu0 0.0
  %1601 = vmatpush1.msra.mxu0 %v340
  %1602 = vmatprep.subr.mxu0 0.0
  %1603 = vmatpush1.msra.mxu0 %v337
  %1604 = vmatprep.subr.mxu0 0.0
  %1605 = vmatpush1.msra.mxu0 %v334
  %1606 = vmatprep.subr.mxu0 0.0
  %1607 = vmatpush1.msra.mxu0 %v331
  %1608 = vmatprep.subr.mxu0 0.0
  %1609 = vmatpush1.msra.mxu0 %v328
  %1610 = vmatprep.subr.mxu0 0.0
  %1611 = vmatpush1.msra.mxu0 %v325
  %1612 = vmatprep.subr.mxu0 0.0
  %1613 = vmatpush1.msra.mxu0 %v322
  %1614 = vmatprep.subr.mxu0 0.0
  %1615 = vmatpush1.msra.mxu0 %v319
  %1616 = vmatprep.subr.mxu0 0.0
  %1617 = vmatpush2.msra.mxu0 0.0
  %1618 = vmatprep.subr.mxu0 0.0
  %1619 = vmatpush2.msra.mxu0 0.0
  %1620 = vmatprep.subr.mxu0 0.0
  %1621 = vmatpush2.msra.mxu0 0.0
  %1622 = vmatprep.subr.mxu0 0.0
  %1623 = vmatpush2.msra.mxu0 0.0
  %1624 = vmatprep.subr.mxu0 0.0
  %1625 = vmatpush2.msra.mxu0 0.0
  %1626 = vmatprep.subr.mxu0 0.0
  %1627 = vmatpush2.msra.mxu0 0.0
  %1628 = vmatprep.subr.mxu0 0.0
  %1629 = vmatpush2.msra.mxu0 0.0
  %1630 = vmatprep.subr.mxu0 0.0
  %1631 = vmatpush2.msra.mxu0 0.0
  %1632 = vmatprep.subr.mxu0 0.0
  %1633 = vmatpush2.msra.mxu0 0.0
  %1634 = vmatprep.subr.mxu0 0.0
  %1635 = vmatpush2.msra.mxu0 0.0
  %1636 = vmatprep.subr.mxu0 0.0
  %1637 = vmatpush2.msra.mxu0 0.0
  %1638 = vmatprep.subr.mxu0 0.0
  %1639 = vmatpush2.msra.mxu0 0.0
  %1640 = vmatprep.subr.mxu0 0.0
  %1641 = vmatpush2.msra.mxu0 0.0
  %1642 = vmatprep.subr.mxu0 0.0
  %1643 = vmatpush2.msra.mxu0 0.0
  %1644 = vmatprep.subr.mxu0 0.0
  %1645 = vmatpush2.msra.mxu0 0.0
  %1646 = vmatprep.subr.mxu0 0.0
  %1647 = vmatpush2.msra.mxu0 0.0
  %1648 = vmatprep.mubr.f32.mxu0 0.0
  %1649 = vmatmul.mubr.f32.gmra.mxu0 %v1512
  %v1650 = vpop.f32.mrf.mxu0
  %v1651 = vadd.f32 0.0, %v1650
  %v1652 = vpop.f32.mrf.mxu0
  %1653 = vdwg.mxu0
  %v1654 = vadd.f32 %v208, %v1580
  %v1655 = vxor.u32 %v1654, 2147483648
  %v1656 = vmul.f32 %v1655, 1.442695
  %v1657 = vpow.pop %v1656
  %v1658 = vadd.f32 %v1657, 1.0
  %v1659 = vrcp.pop %v1658
  %v1660 = vmul.f32 1.0, %v1659
  %v1661 = vadd.f32 %v210, %v1582
  %v1662 = vxor.u32 %v1661, 2147483648
  %v1663 = vmul.f32 %v1662, 1.442695
  %v1664 = vpow.pop %v1663
  %v1665 = vadd.f32 %v1664, 1.0
  %v1666 = vrcp.pop %v1665
  %v1667 = vmul.f32 1.0, %v1666
  %v1668 = vadd.f32 %v1651, %v525
  %v1669 = vmul.f32 %v1660, %v1668
  %v1670 = vadd.f32 %v314, %v1669
  %v1671 = vtanh.pop %v1670
  %v1672 = vsub.f32 1.0, %v1667
  %v1673 = vmul.f32 %v1672, %v1671
  %v1674 = vmul.f32 %v1667, %v1512
  %v1675 = vadd.f32 %v1673, %v1674
  %v1676 = vld [vmem:[%s5] sm:$0xff]
  %v1677 = vld [vmem:[%s5 + $0x8] sm:$0xff]
  %v1678 = vld [vmem:[%s5 + $0x10] sm:$0xff]
  %v1679 = vld [vmem:[%s5 + $0x18] sm:$0xff]
  %v1680 = vld [vmem:[%s5 + $0x20] sm:$0xff]
  %v1681 = vld [vmem:[%s5 + $0x28] sm:$0xff]
  %v1682 = vld [vmem:[%s5 + $0x30] sm:$0xff]
  %v1683 = vld [vmem:[%s5 + $0x38] sm:$0xff]
  %v1684 = vld [vmem:[%s5 + $0x40] sm:$0xff]
  %v1685 = vld [vmem:[%s5 + $0x48] sm:$0xff]
  %v1686 = vld [vmem:[%s5 + $0x50] sm:$0xff]
  %v1687 = vld [vmem:[%s5 + $0x58] sm:$0xff]
  %v1688 = vld [vmem:[%s5 + $0x60] sm:$0xff]
  %v1689 = vld [vmem:[%s5 + $0x68] sm:$0xff]
  %v1690 = vld [vmem:[%s5 + $0x70] sm:$0xff]
  %v1691 = vld [vmem:[%s5 + $0x78] sm:$0xff]
  %v1692 = vld [vmem:[%s6] sm:$0x1]
  %v1694 = vlaneseq
  %v1695 = vshrl.u32 %v1694, 7
  %v1696 = vsub.s32 0, %v1695
  %v1697 = vrot.slane %v1692, %v1696
  %1699 = vmatprep.subr.mxu0 0.0
  %1700 = vmatpush1.msra.mxu0 %v1691
  %1701 = vmatprep.subr.mxu0 0.0
  %1702 = vmatpush1.msra.mxu0 %v1690
  %1703 = vmatprep.subr.mxu0 0.0
  %1704 = vmatpush1.msra.mxu0 %v1689
  %1705 = vmatprep.subr.mxu0 0.0
  %1706 = vmatpush1.msra.mxu0 %v1688
  %1707 = vmatprep.subr.mxu0 0.0
  %1708 = vmatpush1.msra.mxu0 %v1687
  %1709 = vmatprep.subr.mxu0 0.0
  %1710 = vmatpush1.msra.mxu0 %v1686
  %1711 = vmatprep.subr.mxu0 0.0
  %1712 = vmatpush1.msra.mxu0 %v1685
  %1713 = vmatprep.subr.mxu0 0.0
  %1714 = vmatpush1.msra.mxu0 %v1684
  %1715 = vmatprep.subr.mxu0 0.0
  %1716 = vmatpush1.msra.mxu0 %v1683
  %1717 = vmatprep.subr.mxu0 0.0
  %1718 = vmatpush1.msra.mxu0 %v1682
  %1719 = vmatprep.subr.mxu0 0.0
  %1720 = vmatpush1.msra.mxu0 %v1681
  %1721 = vmatprep.subr.mxu0 0.0
  %1722 = vmatpush1.msra.mxu0 %v1680
  %1723 = vmatprep.subr.mxu0 0.0
  %1724 = vmatpush1.msra.mxu0 %v1679
  %1725 = vmatprep.subr.mxu0 0.0
  %1726 = vmatpush1.msra.mxu0 %v1678
  %1727 = vmatprep.subr.mxu0 0.0
  %1728 = vmatpush1.msra.mxu0 %v1677
  %1729 = vmatprep.subr.mxu0 0.0
  %1730 = vmatpush1.msra.mxu0 %v1676
  %1731 = vmatprep.subr.mxu0 0.0
  %1732 = vmatpush2.msra.mxu0 0.0
  %1733 = vmatprep.subr.mxu0 0.0
  %1734 = vmatpush2.msra.mxu0 0.0
  %1735 = vmatprep.subr.mxu0 0.0
  %1736 = vmatpush2.msra.mxu0 0.0
  %1737 = vmatprep.subr.mxu0 0.0
  %1738 = vmatpush2.msra.mxu0 0.0
  %1739 = vmatprep.subr.mxu0 0.0
  %1740 = vmatpush2.msra.mxu0 0.0
  %1741 = vmatprep.subr.mxu0 0.0
  %1742 = vmatpush2.msra.mxu0 0.0
  %1743 = vmatprep.subr.mxu0 0.0
  %1744 = vmatpush2.msra.mxu0 0.0
  %1745 = vmatprep.subr.mxu0 0.0
  %1746 = vmatpush2.msra.mxu0 0.0
  %1747 = vmatprep.subr.mxu0 0.0
  %1748 = vmatpush2.msra.mxu0 0.0
  %1749 = vmatprep.subr.mxu0 0.0
  %1750 = vmatpush2.msra.mxu0 0.0
  %1751 = vmatprep.subr.mxu0 0.0
  %1752 = vmatpush2.msra.mxu0 0.0
  %1753 = vmatprep.subr.mxu0 0.0
  %1754 = vmatpush2.msra.mxu0 0.0
  %1755 = vmatprep.subr.mxu0 0.0
  %1756 = vmatpush2.msra.mxu0 0.0
  %1757 = vmatprep.subr.mxu0 0.0
  %1758 = vmatpush2.msra.mxu0 0.0
  %1759 = vmatprep.subr.mxu0 0.0
  %1760 = vmatpush2.msra.mxu0 0.0
  %1761 = vmatprep.subr.mxu0 0.0
  %1762 = vmatpush2.msra.mxu0 0.0
  %1763 = vmatprep.mubr.f32.mxu0 0.0
  %1764 = vmatmul.mubr.f32.gmra.mxu0 %v1675
  %v1765 = vpop.f32.mrf.mxu0
  %v1766 = vadd.f32 %v1697, %v1765
  %v1767 = vpop.f32.mrf.mxu0
  %1768 = vdwg.mxu0
  %1769 = vst [vmem:[%s7] sm:$0xff] %v1766
  // Predicated region
  $region30: #{gru_net_forward.1} parent=0 // pred_check
    _
  $region31: #{gru_net_forward.1} parent=0 // pred_check_branch
    %1771 = sbr.rel (0) target = $region33
  $region32: #{gru_net_forward.1} parent=0 // pred_region
    _
  $region33: #{gru_net_forward.1} parent=0 // pred_fallthru
    _
  // Predicated region
  $region34: #{gru_net_forward.1} parent=0 // pred_check
    _
  $region35: #{gru_net_forward.1} parent=0 // pred_check_branch
    %1773 = sbr.rel (0) target = $region37
  $region36: #{gru_net_forward.1} parent=0 // pred_region
    _
  $region37: #{gru_net_forward.1} parent=0 // pred_fallthru
    _

</llo_original>
